<compile_context>
chip_gen: v6e
topology: v6e:2x2x1
jax: 0.10.0
libtpu: 0.0.40
codegen_flags: <defaults>
</compile_context>

<pallas_src>
import functools

import numpy as np
import jax
import jax.numpy as jnp
from jax import lax
from jax.experimental import pallas as pl
from jax.experimental.pallas import tpu as pltpu

KERNEL_SIZE = 13
PAD = (KERNEL_SIZE - 1) // 2          # 6
ANCHOR_SIZE = 1000

# Image placement inside the zero-padded VMEM scratch.  Row offset 16 keeps
# the in-kernel copy sublane-aligned (16 % 8 == 0) and leaves the >= 12 rows
# of zeros the two uncentered (rightward/downward-looking) sweeps need above
# the image; column offset 12 is the minimum left margin (a 128-aligned column
# offset would avoid one lane relayout on the copy but costs ~12% extra padded
# width on every sweep — a net loss).
OY = 16
OX = 12


def _round_up(n, m):
    return ((n + m - 1) // m) * m


def _morph_kernel(x_ref, ycnt_ref, xcnt_ref, *rest, h, w, exact_halo):
    """13x13 zero-padded min (erosion) then 13x13 zero-padded max (dilation)
    of the h x w image, plus per-row / per-column counts of positive dilation
    pixels.

    Zero padding is fused: the image is copied into a zeroed (Hp, Wp) VMEM
    scratch at offset (OY, OX).  Both van-Herk cascades are uncentered
    (window [k, k+12]); the offsets fold into the output indexing:
        erosion  E[i, j] == ero[OY-6  + i, OX-6  + j]
        dilation D[i, j] == dil[OY-12 + i, OX-12 + j]
    Roll wrap-around only corrupts indices >= n-12, which never feed a real
    output because Hp >= h + OY + 6 and Wp >= w + OX + 6.

    The 6-wide ring of erosion values around the real erosion region (which
    the dilation's zero padding should see as exact zeros) is guaranteed <= 0
    here — every such window contains at least one halo zero — and max() over
    values <= 0 cannot change (dil > 0), so the production path skips
    re-zeroing it.  exact_halo=True (debug only) re-zeroes it so the full
    dilation matches reduce_window exactly even for mixed-sign inputs.
    """
    a_ref = rest[-1]
    dil_ref = rest[0] if len(rest) == 2 else None
    Hp, Wp = a_ref.shape
    f32 = jnp.float32

    # ---- fused zero padding: zero the scratch, drop the image in ----------
    # (The full zero store lands in the vst slot, which has slack; it replaces
    #  a wrapper-side jnp.pad that cost a full HBM write + re-read.)
    a_ref[...] = jnp.zeros((Hp, Wp), f32)
    a_ref[OY:OY + h, OX:OX + w] = x_ref[...]

    def sweep(v, axis, op):
        # Uncentered 13-tap running min/max: out[k] = op(v[k], ..., v[k+12]).
        n = v.shape[axis]

        def sh(a, d):                     # out[k] = a[k + d]  (mod n)
            return pltpu.roll(a, shift=(-d) % n, axis=axis)

        m2 = op(v, sh(v, 1))              # window of 2
        m4 = op(m2, sh(m2, 2))            # window of 4
        m8 = op(m4, sh(m4, 4))            # window of 8
        return op(m8, sh(m8, 5))          # window of 13 (overlap ok for min/max)

    def filt(v, op):                      # separable 13x13 filter
        return sweep(sweep(v, 1, op), 0, op)   # lanes first, then sublanes

    ero = filt(a_ref[...], jnp.minimum)   # erosion; real part at (OY-6, OX-6)

    if exact_halo:
        # Debug path only: make the ring around the erosion region exactly
        # zero so the dilation *values* (not just their sign) are exact.
        rid = lax.broadcasted_iota(jnp.int32, (Hp, 1), 0)
        cid = lax.broadcasted_iota(jnp.int32, (1, Wp), 1)
        rm = ((rid >= OY - PAD) & (rid < OY - PAD + h)).astype(f32)
        cm = ((cid >= OX - PAD) & (cid < OX - PAD + w)).astype(f32)
        ero = ero * (rm * cm)

    # TODO(synk): bf16 binary dilation (b = (ero > 0)) on v6e/v7x would halve
    # the dilation-phase roll/vmax work; kept f32 for portability (v5e has no
    # bf16 VPU) and to avoid packed-dtype roll lowering risk.
    dil = filt(ero, jnp.maximum)          # dilation; real part at (OY-12, OX-12)

    if dil_ref is not None:               # debug/self-test-only full output
        dil_ref[...] = dil

    pos = (dil > 0).astype(f32)

    # Row counts (cross-lane sums) on the otherwise-idle MXU.  0/1 values are
    # exact in bf16 and accumulation stays f32, so the matvec is exact while
    # using ~3x fewer MXU passes in the (bottleneck) vector-extended slot.
    cid_c = lax.broadcasted_iota(jnp.int32, (Wp, 1), 0)
    cmask = ((cid_c >= OX - 2 * PAD) &
             (cid_c < OX - 2 * PAD + w)).astype(jnp.bfloat16)       # (Wp, 1)
    ycnt = jnp.dot(pos.astype(jnp.bfloat16), cmask,
                   preferred_element_type=jnp.float32)              # (Hp, 1)
    ycnt_ref[...] = ycnt[OY - 2 * PAD:OY - 2 * PAD + h, :]

    # Column counts are a sublane-direction sum -> plain VPU adds (keeps the
    # vector-extended slot free for the rolls).
    rid_c = lax.broadcasted_iota(jnp.int32, (Hp, 1), 0)
    rmask = ((rid_c >= OY - 2 * PAD) &
             (rid_c < OY - 2 * PAD + h)).astype(f32)                # (Hp, 1)
    xcnt = jnp.sum(pos * rmask, axis=0, keepdims=True)              # (1, Wp)
    xcnt_ref[...] = xcnt[:, OX - 2 * PAD:OX - 2 * PAD + w]


def _morph_pallas(x1, *, with_dil=False):
    """Run the fused pad + morphology + count kernel on image x1 (h, w).

    Returns (ycnt, xcnt): per-row / per-column counts of positive pixels of
    the 13x13 zero-padded erosion-then-dilation of x1.  with_dil=True
    additionally returns the (h, w) dilation (debug/self-test only)."""
    h, w = x1.shape
    Hp = _round_up(h + OY + PAD, 8)       # wrap-safety: Hp >= h + OY + 6
    Wp = _round_up(w + OX + PAD, 128)     #              Wp >= w + OX + 6

    out_shape = [jax.ShapeDtypeStruct((h, 1), jnp.float32),
                 jax.ShapeDtypeStruct((1, w), jnp.float32)]
    out_specs = [pl.BlockSpec((h, 1), lambda i: (0, 0)),
                 pl.BlockSpec((1, w), lambda i: (0, 0))]
    if with_dil:
        out_shape.append(jax.ShapeDtypeStruct((Hp, Wp), jnp.float32))
        out_specs.append(pl.BlockSpec((Hp, Wp), lambda i: (0, 0)))

    # Peak VMEM = input block (+ pipeline copy) + padded scratch + a handful
    # of live full-size f32 temps; clamp to [32, 48] MiB so the request stays
    # well under v7x's 64 MiB while never under-providing for anchor_size=1000.
    full_b = Hp * Wp * 4
    est = 2 * h * w * 4 + (9 if with_dil else 7) * full_b + (2 << 20)
    vmem_limit = int(min(max(est, 32 << 20), 48 << 20))

    outs = pl.pallas_call(
        functools.partial(_morph_kernel, h=h, w=w, exact_halo=with_dil),
        out_shape=tuple(out_shape),
        grid=(1,),
        in_specs=[pl.BlockSpec((h, w), lambda i: (0, 0))],
        out_specs=tuple(out_specs),
        scratch_shapes=[pltpu.VMEM((Hp, Wp), jnp.float32)],
        compiler_params=pltpu.CompilerParams(
            dimension_semantics=("arbitrary",),
            vmem_limit_bytes=vmem_limit),
    )(x1.astype(jnp.float32))
    # TODO(synk): v7x row-strip grid with "parallel" semantics for 2 TensorCores.

    ycnt = outs[0][:, 0]                  # (h,)
    xcnt = outs[1][0, :]                  # (w,)
    if with_dil:
        dil = outs[2][OY - 2 * PAD:OY - 2 * PAD + h,
                      OX - 2 * PAD:OX - 2 * PAD + w]
        return ycnt, xcnt, dil
    return ycnt, xcnt


def filter_image(x, anchor_size=ANCHOR_SIZE):
    """Returns (y_idx, x_idx): per-row / per-column keep scores at the
    original resolution (the torch module up to, but not including, the final
    data-dependent boolean crop)."""
    x = x.astype(jnp.float32)
    H, W = x.shape

    downsize = max(1.0, float(max(H, W)) / float(anchor_size))
    if downsize > 1.0:
        # TODO(synk): torch uses bilinear align_corners=True + antialias=True;
        # jax.image.resize uses half-pixel centers — a sub-pixel difference
        # for large antialiased downsamples.
        h, w = int(H / downsize), int(W / downsize)
        x1 = jax.image.resize(x, (h, w), method="linear", antialias=True)
    else:
        x1 = x

    ycnt, xcnt = _morph_pallas(x1)

    # F.interpolate(mode='bilinear', align_corners=False, antialias=False)
    # along the length axis back to the original resolution.
    y_idx = jax.image.resize(ycnt, (H,), method="linear", antialias=False)
    x_idx = jax.image.resize(xcnt, (W,), method="linear", antialias=False)
    return y_idx, x_idx


def _reference_morph(x):
    """Plain-XLA reference for the zero-padded erosion+dilation."""
    xp = jnp.pad(x, PAD)
    ero = lax.reduce_window(xp, jnp.inf, lax.min,
                            (KERNEL_SIZE, KERNEL_SIZE), (1, 1), "VALID")
    dil = lax.reduce_window(jnp.pad(ero, PAD), -jnp.inf, lax.max,
                            (KERNEL_SIZE, KERNEL_SIZE), (1, 1), "VALID")
    return dil


if __name__ == "__main__":
    key = jax.random.PRNGKey(0)
    k1, k2 = jax.random.split(key)

    # Small, deliberately non-(8,128)-aligned 2D image (forward takes a 2D tensor).
    H, W = 120, 200
    x = jnp.zeros((H, W), jnp.float32)
    interior = jax.random.uniform(k1, (72, 120), dtype=jnp.float32) + 0.1
    x = x.at[24:96, 40:160].set(interior)

    # Production hot path + glue.
    y_idx, x_idx = jax.block_until_ready(filter_image(x))

    # Correctness 1: in-kernel morphology vs reduce_window reference (debug path).
    _, _, dil = _morph_pallas(x, with_dil=True)
    dil = jax.block_until_ready(dil)
    dil_ref = jax.block_until_ready(_reference_morph(x))
    np.testing.assert_allclose(np.asarray(dil), np.asarray(dil_ref),
                               rtol=1e-6, atol=1e-6)

    # Correctness 2: production-path counts vs a plain-XLA reference.
    ycnt, xcnt = _morph_pallas(x)
    pos_ref = (dil_ref > 0).astype(jnp.float32)
    np.testing.assert_allclose(np.asarray(ycnt),
                               np.asarray(jnp.sum(pos_ref, axis=1)),
                               rtol=0, atol=1e-5)
    np.testing.assert_allclose(np.asarray(xcnt),
                               np.asarray(jnp.sum(pos_ref, axis=0)),
                               rtol=0, atol=1e-5)

    # Correctness 3: mixed-sign values, different odd shape (exercises the
    # exact-halo debug path, the "<=0 ring" production shortcut and a
    # different padded block size).
    H2, W2 = 56, 72
    x2 = jax.random.normal(k2, (H2, W2), dtype=jnp.float32)
    _, _, dil2 = _morph_pallas(x2, with_dil=True)
    dil2_ref = jax.block_until_ready(_reference_morph(x2))
    np.testing.assert_allclose(np.asarray(jax.block_until_ready(dil2)),
                               np.asarray(dil2_ref), rtol=1e-6, atol=1e-6)
    ycnt2, xcnt2 = _morph_pallas(x2)
    pos_ref2 = (dil2_ref > 0).astype(jnp.float32)
    np.testing.assert_allclose(np.asarray(ycnt2),
                               np.asarray(jnp.sum(pos_ref2, axis=1)),
                               rtol=0, atol=1e-5)
    np.testing.assert_allclose(np.asarray(xcnt2),
                               np.asarray(jnp.sum(pos_ref2, axis=0)),
                               rtol=0, atol=1e-5)

    # Final data-dependent crop (torch: x[y_idx > 0][:, x_idx > 0]) — dynamic
    # output shape, so it is performed on host with numpy.
    xn = np.asarray(x)
    xout = xn[np.asarray(y_idx) > 0][:, np.asarray(x_idx) > 0]
    assert xout.ndim == 2 and xout.size > 0

    print("KERNEL_OK")
</pallas_src>

<mosaic_0001>
module attributes {stable_mosaic.version = 11 : i64} {
  func.func @_morph_kernel(%arg0: i32, %arg1: memref<120x200xf32, #tpu.memory_space<vmem>>, %arg2: memref<120x1xf32, #tpu.memory_space<vmem>>, %arg3: memref<1x200xf32, #tpu.memory_space<vmem>>, %arg4: memref<144x256xf32, #tpu.memory_space<vmem>>) attributes {dimension_semantics = [#tpu.dimension_semantics<arbitrary>], iteration_bounds = array<i64: 1>, scalar_prefetch = 0 : i64, scratch_operands = 1 : i64, tpu.core_type = #tpu.core_type<tc>, window_params = [{pipeline_mode = #tpu.pipeline_mode<synchronous>, transform_indices = @transform_0, window_bounds = array<i64: 120, 200>}, {pipeline_mode = #tpu.pipeline_mode<synchronous>, transform_indices = @transform_1, window_bounds = array<i64: 120, 1>}, {pipeline_mode = #tpu.pipeline_mode<synchronous>, transform_indices = @transform_2, window_bounds = array<i64: 1, 200>}]} {
    %cst = arith.constant 0.000000e+00 : f32
    %0 = vector.broadcast %cst : f32 to vector<144x256xf32>
    %c0 = arith.constant 0 : index
    %c0_0 = arith.constant 0 : index
    %1 = vector.load %arg4[%c0, %c0_0] : memref<144x256xf32, #tpu.memory_space<vmem>>, vector<144x256xf32>
    tpu.vector_store %arg4[%c0, %c0_0], %0 {strides = array<i32>} : memref<144x256xf32, #tpu.memory_space<vmem>>, vector<144x256xf32>,
    %c0_1 = arith.constant 0 : index
    %c0_2 = arith.constant 0 : index
    %2 = vector.load %arg1[%c0_1, %c0_2] : memref<120x200xf32, #tpu.memory_space<vmem>>, vector<120x200xf32>
    %c16 = arith.constant 16 : index
    %c12 = arith.constant 12 : index
    %3 = vector.load %arg4[%c16, %c12] : memref<144x256xf32, #tpu.memory_space<vmem>>, vector<120x200xf32>
    tpu.vector_store %arg4[%c16, %c12], %2 {strides = array<i32>} : memref<144x256xf32, #tpu.memory_space<vmem>>, vector<120x200xf32>,
    %c0_3 = arith.constant 0 : index
    %c0_4 = arith.constant 0 : index
    %4 = vector.load %arg4[%c0_3, %c0_4] : memref<144x256xf32, #tpu.memory_space<vmem>>, vector<144x256xf32>
    %c255_i32 = arith.constant 255 : i32
    %5 = tpu.dynamic_rotate %4 by %c255_i32 dim 1 : vector<144x256xf32>, i32 -> vector<144x256xf32>
    %6 = arith.minimumf %4, %5 : vector<144x256xf32>
    %c254_i32 = arith.constant 254 : i32
    %7 = tpu.dynamic_rotate %6 by %c254_i32 dim 1 : vector<144x256xf32>, i32 -> vector<144x256xf32>
    %8 = arith.minimumf %6, %7 : vector<144x256xf32>
    %c252_i32 = arith.constant 252 : i32
    %9 = tpu.dynamic_rotate %8 by %c252_i32 dim 1 : vector<144x256xf32>, i32 -> vector<144x256xf32>
    %10 = arith.minimumf %8, %9 : vector<144x256xf32>
    %c251_i32 = arith.constant 251 : i32
    %11 = tpu.dynamic_rotate %10 by %c251_i32 dim 1 : vector<144x256xf32>, i32 -> vector<144x256xf32>
    %12 = arith.minimumf %10, %11 : vector<144x256xf32>
    %c143_i32 = arith.constant 143 : i32
    %13 = tpu.dynamic_rotate %12 by %c143_i32 dim 0 : vector<144x256xf32>, i32 -> vector<144x256xf32>
    %14 = arith.minimumf %12, %13 : vector<144x256xf32>
    %c142_i32 = arith.constant 142 : i32
    %15 = tpu.dynamic_rotate %14 by %c142_i32 dim 0 : vector<144x256xf32>, i32 -> vector<144x256xf32>
    %16 = arith.minimumf %14, %15 : vector<144x256xf32>
    %c140_i32 = arith.constant 140 : i32
    %17 = tpu.dynamic_rotate %16 by %c140_i32 dim 0 : vector<144x256xf32>, i32 -> vector<144x256xf32>
    %18 = arith.minimumf %16, %17 : vector<144x256xf32>
    %c139_i32 = arith.constant 139 : i32
    %19 = tpu.dynamic_rotate %18 by %c139_i32 dim 0 : vector<144x256xf32>, i32 -> vector<144x256xf32>
    %20 = arith.minimumf %18, %19 : vector<144x256xf32>
    %c255_i32_5 = arith.constant 255 : i32
    %21 = tpu.dynamic_rotate %20 by %c255_i32_5 dim 1 : vector<144x256xf32>, i32 -> vector<144x256xf32>
    %22 = arith.maximumf %20, %21 : vector<144x256xf32>
    %c254_i32_6 = arith.constant 254 : i32
    %23 = tpu.dynamic_rotate %22 by %c254_i32_6 dim 1 : vector<144x256xf32>, i32 -> vector<144x256xf32>
    %24 = arith.maximumf %22, %23 : vector<144x256xf32>
    %c252_i32_7 = arith.constant 252 : i32
    %25 = tpu.dynamic_rotate %24 by %c252_i32_7 dim 1 : vector<144x256xf32>, i32 -> vector<144x256xf32>
    %26 = arith.maximumf %24, %25 : vector<144x256xf32>
    %c251_i32_8 = arith.constant 251 : i32
    %27 = tpu.dynamic_rotate %26 by %c251_i32_8 dim 1 : vector<144x256xf32>, i32 -> vector<144x256xf32>
    %28 = arith.maximumf %26, %27 : vector<144x256xf32>
    %c143_i32_9 = arith.constant 143 : i32
    %29 = tpu.dynamic_rotate %28 by %c143_i32_9 dim 0 : vector<144x256xf32>, i32 -> vector<144x256xf32>
    %30 = arith.maximumf %28, %29 : vector<144x256xf32>
    %c142_i32_10 = arith.constant 142 : i32
    %31 = tpu.dynamic_rotate %30 by %c142_i32_10 dim 0 : vector<144x256xf32>, i32 -> vector<144x256xf32>
    %32 = arith.maximumf %30, %31 : vector<144x256xf32>
    %c140_i32_11 = arith.constant 140 : i32
    %33 = tpu.dynamic_rotate %32 by %c140_i32_11 dim 0 : vector<144x256xf32>, i32 -> vector<144x256xf32>
    %34 = arith.maximumf %32, %33 : vector<144x256xf32>
    %c139_i32_12 = arith.constant 139 : i32
    %35 = tpu.dynamic_rotate %34 by %c139_i32_12 dim 0 : vector<144x256xf32>, i32 -> vector<144x256xf32>
    %36 = arith.maximumf %34, %35 : vector<144x256xf32>
    %cst_13 = arith.constant 0.000000e+00 : f32
    %37 = vector.broadcast %cst_13 : f32 to vector<144x256xf32>
    %38 = arith.cmpf ogt, %36, %37 : vector<144x256xf32>
    %39 = arith.extui %38 : vector<144x256xi1> to vector<144x256xi32>
    %40 = arith.sitofp %39 : vector<144x256xi32> to vector<144x256xf32>
    %41 = tpu.iota {dimensions = array<i32: 0>} : vector<256x1xi32>
    %c0_i32 = arith.constant 0 : i32
    %42 = vector.broadcast %c0_i32 : i32 to vector<256x1xi32>
    %43 = arith.cmpi sge, %41, %42 : vector<256x1xi32>
    %c200_i32 = arith.constant 200 : i32
    %44 = vector.broadcast %c200_i32 : i32 to vector<256x1xi32>
    %45 = arith.cmpi slt, %41, %44 : vector<256x1xi32>
    %46 = arith.andi %43, %45 : vector<256x1xi1>
    %47 = arith.extui %46 : vector<256x1xi1> to vector<256x1xi32>
    %48 = arith.sitofp %47 : vector<256x1xi32> to vector<256x1xf32>
    %49 = arith.truncf %48 : vector<256x1xf32> to vector<256x1xbf16>
    %50 = arith.truncf %40 : vector<144x256xf32> to vector<144x256xbf16>
    %cst_14 = arith.constant dense<0.000000e+00> : vector<144x1xf32>
    %51 = tpu.matmul %50, %49, %cst_14 {dimension_numbers = #tpu.dot_dimension_numbers<[1], [0], [0], [1], [0, 0, 1, 1], [], []>} : vector<144x256xbf16>, vector<256x1xbf16>, vector<144x1xf32> -> vector<144x1xf32>
    %52 = vector.extract_strided_slice %51 {offsets = [4, 0], sizes = [120, 1], strides = [1, 1]} : vector<144x1xf32> to vector<120x1xf32>
    %c0_15 = arith.constant 0 : index
    %c0_16 = arith.constant 0 : index
    %53 = vector.load %arg2[%c0_15, %c0_16] : memref<120x1xf32, #tpu.memory_space<vmem>>, vector<120x1xf32>
    tpu.vector_store %arg2[%c0_15, %c0_16], %52 {strides = array<i32>} : memref<120x1xf32, #tpu.memory_space<vmem>>, vector<120x1xf32>,
    %54 = tpu.iota {dimensions = array<i32: 0>} : vector<144x1xi32>
    %c4_i32 = arith.constant 4 : i32
    %55 = vector.broadcast %c4_i32 : i32 to vector<144x1xi32>
    %56 = arith.cmpi sge, %54, %55 : vector<144x1xi32>
    %c124_i32 = arith.constant 124 : i32
    %57 = vector.broadcast %c124_i32 : i32 to vector<144x1xi32>
    %58 = arith.cmpi slt, %54, %57 : vector<144x1xi32>
    %59 = arith.andi %56, %58 : vector<144x1xi1>
    %60 = arith.extui %59 : vector<144x1xi1> to vector<144x1xi32>
    %61 = arith.sitofp %60 : vector<144x1xi32> to vector<144x1xf32>
    %62 = vector.broadcast %61 : vector<144x1xf32> to vector<144x256xf32>
    %63 = arith.mulf %40, %62 : vector<144x256xf32>
    %cst_17 = arith.constant dense<0.000000e+00> : vector<256xf32>
    %64 = vector.multi_reduction <add>, %63, %cst_17 [0] : vector<144x256xf32> to vector<256xf32>
    %65 = vector.shape_cast %64 : vector<256xf32> to vector<1x256xf32>
    %66 = vector.extract_strided_slice %65 {offsets = [0, 0], sizes = [1, 200], strides = [1, 1]} : vector<1x256xf32> to vector<1x200xf32>
    %c0_18 = arith.constant 0 : index
    %c0_19 = arith.constant 0 : index
    %67 = vector.load %arg3[%c0_18, %c0_19] : memref<1x200xf32, #tpu.memory_space<vmem>>, vector<1x200xf32>
    tpu.vector_store %arg3[%c0_18, %c0_19], %66 {strides = array<i32>} : memref<1x200xf32, #tpu.memory_space<vmem>>, vector<1x200xf32>,
    return
  }
  func.func @transform_0(%arg0: i32) -> (i32, i32) {
    %c0_i32 = arith.constant 0 : i32
    %c0_i32_0 = arith.constant 0 : i32
    %c0_i32_1 = arith.constant 0 : i32
    return %c0_i32, %c0_i32_0 : i32, i32
  }
  func.func @transform_1(%arg0: i32) -> (i32, i32) {
    %c0_i32 = arith.constant 0 : i32
    %c0_i32_0 = arith.constant 0 : i32
    %c0_i32_1 = arith.constant 0 : i32
    return %c0_i32, %c0_i32_0 : i32, i32
  }
  func.func @transform_2(%arg0: i32) -> (i32, i32) {
    %c0_i32 = arith.constant 0 : i32
    %c0_i32_0 = arith.constant 0 : i32
    %c0_i32_1 = arith.constant 0 : i32
    return %c0_i32, %c0_i32_0 : i32, i32
  }
}

</mosaic_0001>

<llo_original>
// kernel: tpu_custom_call.1
$region0: #{tpu_custom_call.1}
  #allocation0 [shape = 'u32[]', space=smem, size = 0x4, offset = 0x4, fixed_abs, tag = 'smem constant byte address 0x4 - core index']
  #allocation1 [shape = 'u32[144,128]{1,0:T(1,128)}', space=vmem, size = 0x12000, scoped, tag = 'internal scratch']
  #allocation2 [shape = 'f32[144,256]{1,0:T(8,128)}', space=vmem, size = 0x24000, scoped, tag = 'scratch operand']
  %s0 = inlined_call_operand.vmem [shape: f32[120,200], index: 0, kind: input, shape index: {}]
  %s1 = inlined_call_operand.vmem [shape: f32[120,1], index: 1, kind: output, shape index: {0}]
  %s2 = inlined_call_operand.hbm [shape: f32[1,200], index: 2, kind: output, shape index: {1}]
  %3 = xla_tuple %s1, %s2
  %s4 = sld [smem:[#allocation0]]
  $region22: #{tpu_custom_call.1} parent=0
    _
  %s6 = ssub.s32 1, %s4
  %s7 = scalar_select 0, %s6, %s4
  $region1: #{tpu_custom_call.1} parent=0
    #allocation3 [shape = 'u8[1024]{0}', space=vmem, size = 0x400, scoped, tag = 'output window, operand 1, single buffered']
    #allocation4 [shape = 's32[1]{0}', space=sflag, size = 0x4, scoped, tag = 'scoped memory for tpu_custom_call.1']
    %8 = vsyncpa [#allocation4], 0
    // Predicated region
    $region2: #{tpu_custom_call.1} parent=1 // pred_check
      _
    $region3: #{tpu_custom_call.1} parent=1 // pred_check_branch
      %10 = sbr.rel (0) target = $region5
    $region4: #{tpu_custom_call.1} parent=1 // pred_region
      _
    $region5: #{tpu_custom_call.1} parent=1 // pred_fallthru
      _
    %12 = vst [vmem:[#allocation2] sm:$0xff] 0.0
    %13 = vst [vmem:[#allocation2 + $0x8] sm:$0xff] 0.0
    %14 = vst [vmem:[#allocation2 + $0x10] sm:$0xff] 0.0
    %15 = vst [vmem:[#allocation2 + $0x18] sm:$0xff] 0.0
    %16 = vst [vmem:[#allocation2 + $0x20] sm:$0xff] 0.0
    %17 = vst [vmem:[#allocation2 + $0x28] sm:$0xff] 0.0
    %18 = vst [vmem:[#allocation2 + $0x30] sm:$0xff] 0.0
    %19 = vst [vmem:[#allocation2 + $0x38] sm:$0xff] 0.0
    %20 = vst [vmem:[#allocation2 + $0x40] sm:$0xff] 0.0
    %21 = vst [vmem:[#allocation2 + $0x48] sm:$0xff] 0.0
    %22 = vst [vmem:[#allocation2 + $0x50] sm:$0xff] 0.0
    %23 = vst [vmem:[#allocation2 + $0x58] sm:$0xff] 0.0
    %24 = vst [vmem:[#allocation2 + $0x60] sm:$0xff] 0.0
    %25 = vst [vmem:[#allocation2 + $0x68] sm:$0xff] 0.0
    %26 = vst [vmem:[#allocation2 + $0x70] sm:$0xff] 0.0
    %27 = vst [vmem:[#allocation2 + $0x78] sm:$0xff] 0.0
    %28 = vst [vmem:[#allocation2 + $0x80] sm:$0xff] 0.0
    %29 = vst [vmem:[#allocation2 + $0x88] sm:$0xff] 0.0
    %30 = vst [vmem:[#allocation2 + $0x90] sm:$0xff] 0.0
    %31 = vst [vmem:[#allocation2 + $0x98] sm:$0xff] 0.0
    %32 = vst [vmem:[#allocation2 + $0xa0] sm:$0xff] 0.0
    %33 = vst [vmem:[#allocation2 + $0xa8] sm:$0xff] 0.0
    %34 = vst [vmem:[#allocation2 + $0xb0] sm:$0xff] 0.0
    %35 = vst [vmem:[#allocation2 + $0xb8] sm:$0xff] 0.0
    %36 = vst [vmem:[#allocation2 + $0xc0] sm:$0xff] 0.0
    %37 = vst [vmem:[#allocation2 + $0xc8] sm:$0xff] 0.0
    %38 = vst [vmem:[#allocation2 + $0xd0] sm:$0xff] 0.0
    %39 = vst [vmem:[#allocation2 + $0xd8] sm:$0xff] 0.0
    %40 = vst [vmem:[#allocation2 + $0xe0] sm:$0xff] 0.0
    %41 = vst [vmem:[#allocation2 + $0xe8] sm:$0xff] 0.0
    %42 = vst [vmem:[#allocation2 + $0xf0] sm:$0xff] 0.0
    %43 = vst [vmem:[#allocation2 + $0xf8] sm:$0xff] 0.0
    %44 = vst [vmem:[#allocation2 + $0x100] sm:$0xff] 0.0
    %45 = vst [vmem:[#allocation2 + $0x108] sm:$0xff] 0.0
    %46 = vst [vmem:[#allocation2 + $0x110] sm:$0xff] 0.0
    %47 = vst [vmem:[#allocation2 + $0x118] sm:$0xff] 0.0
    %v48 = vld [vmem:[%s0] sm:$0xff]
    %v49 = vld [vmem:[%s0 + $0x8] sm:$0xff]
    %v50 = vld [vmem:[%s0 + $0x10] sm:$0xff]
    %v51 = vld [vmem:[%s0 + $0x18] sm:$0xff]
    %v52 = vld [vmem:[%s0 + $0x20] sm:$0xff]
    %v53 = vld [vmem:[%s0 + $0x28] sm:$0xff]
    %v54 = vld [vmem:[%s0 + $0x30] sm:$0xff]
    %v55 = vld [vmem:[%s0 + $0x38] sm:$0xff]
    %v56 = vld [vmem:[%s0 + $0x40] sm:$0xff]
    %v57 = vld [vmem:[%s0 + $0x48] sm:$0xff]
    %v58 = vld [vmem:[%s0 + $0x50] sm:$0xff]
    %v59 = vld [vmem:[%s0 + $0x58] sm:$0xff]
    %v60 = vld [vmem:[%s0 + $0x60] sm:$0xff]
    %v61 = vld [vmem:[%s0 + $0x68] sm:$0xff]
    %v62 = vld [vmem:[%s0 + $0x70] sm:$0xff]
    %v63 = vld [vmem:[%s0 + $0x78] sm:$0xff]
    %v64 = vld [vmem:[%s0 + $0x80] sm:$0xff]
    %v65 = vld [vmem:[%s0 + $0x88] sm:$0xff]
    %v66 = vld [vmem:[%s0 + $0x90] sm:$0xff]
    %v67 = vld [vmem:[%s0 + $0x98] sm:$0xff]
    %v68 = vld [vmem:[%s0 + $0xa0] sm:$0xff]
    %v69 = vld [vmem:[%s0 + $0xa8] sm:$0xff]
    %v70 = vld [vmem:[%s0 + $0xb0] sm:$0xff]
    %v71 = vld [vmem:[%s0 + $0xb8] sm:$0xff]
    %v72 = vld [vmem:[%s0 + $0xc0] sm:$0xff]
    %v73 = vld [vmem:[%s0 + $0xc8] sm:$0xff]
    %v74 = vld [vmem:[%s0 + $0xd0] sm:$0xff]
    %v75 = vld [vmem:[%s0 + $0xd8] sm:$0xff]
    %v76 = vld [vmem:[%s0 + $0xe0] sm:$0xff]
    %v77 = vld [vmem:[%s0 + $0xe8] sm:$0xff]
    %108 = vrot.lane.b32.xlu0 %v48, 12
    %v109 = vpop.permute.xlu0 %108
    %110 = vrot.lane.b32.xlu0 %v49, 12
    %v111 = vpop.permute.xlu0 %110
    %112 = vrot.lane.b32.xlu0 %v50, 12
    %v113 = vpop.permute.xlu0 %112
    %114 = vrot.lane.b32.xlu0 %v51, 12
    %v115 = vpop.permute.xlu0 %114
    %116 = vrot.lane.b32.xlu0 %v52, 12
    %v117 = vpop.permute.xlu0 %116
    %118 = vrot.lane.b32.xlu0 %v53, 12
    %v119 = vpop.permute.xlu0 %118
    %120 = vrot.lane.b32.xlu0 %v54, 12
    %v121 = vpop.permute.xlu0 %120
    %122 = vrot.lane.b32.xlu0 %v55, 12
    %v123 = vpop.permute.xlu0 %122
    %124 = vrot.lane.b32.xlu0 %v56, 12
    %v125 = vpop.permute.xlu0 %124
    %126 = vrot.lane.b32.xlu0 %v57, 12
    %v127 = vpop.permute.xlu0 %126
    %128 = vrot.lane.b32.xlu0 %v58, 12
    %v129 = vpop.permute.xlu0 %128
    %130 = vrot.lane.b32.xlu0 %v59, 12
    %v131 = vpop.permute.xlu0 %130
    %132 = vrot.lane.b32.xlu0 %v60, 12
    %v133 = vpop.permute.xlu0 %132
    %134 = vrot.lane.b32.xlu0 %v61, 12
    %v135 = vpop.permute.xlu0 %134
    %136 = vrot.lane.b32.xlu0 %v62, 12
    %v137 = vpop.permute.xlu0 %136
    %138 = vrot.lane.b32.xlu0 %v63, 12
    %v139 = vpop.permute.xlu0 %138
    %140 = vrot.lane.b32.xlu0 %v64, 12
    %v141 = vpop.permute.xlu0 %140
    %142 = vrot.lane.b32.xlu0 %v65, 12
    %v143 = vpop.permute.xlu0 %142
    %144 = vrot.lane.b32.xlu0 %v66, 12
    %v145 = vpop.permute.xlu0 %144
    %146 = vrot.lane.b32.xlu0 %v67, 12
    %v147 = vpop.permute.xlu0 %146
    %148 = vrot.lane.b32.xlu0 %v68, 12
    %v149 = vpop.permute.xlu0 %148
    %150 = vrot.lane.b32.xlu0 %v69, 12
    %v151 = vpop.permute.xlu0 %150
    %152 = vrot.lane.b32.xlu0 %v70, 12
    %v153 = vpop.permute.xlu0 %152
    %154 = vrot.lane.b32.xlu0 %v71, 12
    %v155 = vpop.permute.xlu0 %154
    %156 = vrot.lane.b32.xlu0 %v72, 12
    %v157 = vpop.permute.xlu0 %156
    %158 = vrot.lane.b32.xlu0 %v73, 12
    %v159 = vpop.permute.xlu0 %158
    %160 = vrot.lane.b32.xlu0 %v74, 12
    %v161 = vpop.permute.xlu0 %160
    %162 = vrot.lane.b32.xlu0 %v75, 12
    %v163 = vpop.permute.xlu0 %162
    %164 = vrot.lane.b32.xlu0 %v76, 12
    %v165 = vpop.permute.xlu0 %164
    %166 = vrot.lane.b32.xlu0 %v77, 12
    %v167 = vpop.permute.xlu0 %166
    %vm168 = vcmask 97280
    %v169 = vsel %vm168, %v109, %v111
    %v170 = vsel %vm168, %v113, %v115
    %v171 = vsel %vm168, %v117, %v119
    %v172 = vsel %vm168, %v121, %v123
    %v173 = vsel %vm168, %v125, %v127
    %v174 = vsel %vm168, %v129, %v131
    %v175 = vsel %vm168, %v133, %v135
    %v176 = vsel %vm168, %v137, %v139
    %v177 = vsel %vm168, %v141, %v143
    %v178 = vsel %vm168, %v145, %v147
    %v179 = vsel %vm168, %v149, %v151
    %v180 = vsel %vm168, %v153, %v155
    %v181 = vsel %vm168, %v157, %v159
    %v182 = vsel %vm168, %v161, %v163
    %v183 = vsel %vm168, %v165, %v167
    %vm214 = vcmask 1047648
    %215 = vst.msk [vmem:[#allocation2 + $0x20] sm:$0xff] %vm214, %v109
    %vm216 = vcmask 687104
    %217 = vst.msk [vmem:[#allocation2 + $0x28] sm:$0xff] %vm216, %v169
    %218 = vst.msk [vmem:[#allocation2 + $0x30] sm:$0xff] %vm214, %v113
    %219 = vst.msk [vmem:[#allocation2 + $0x38] sm:$0xff] %vm216, %v170
    %220 = vst.msk [vmem:[#allocation2 + $0x40] sm:$0xff] %vm214, %v117
    %221 = vst.msk [vmem:[#allocation2 + $0x48] sm:$0xff] %vm216, %v171
    %222 = vst.msk [vmem:[#allocation2 + $0x50] sm:$0xff] %vm214, %v121
    %223 = vst.msk [vmem:[#allocation2 + $0x58] sm:$0xff] %vm216, %v172
    %224 = vst.msk [vmem:[#allocation2 + $0x60] sm:$0xff] %vm214, %v125
    %225 = vst.msk [vmem:[#allocation2 + $0x68] sm:$0xff] %vm216, %v173
    %226 = vst.msk [vmem:[#allocation2 + $0x70] sm:$0xff] %vm214, %v129
    %227 = vst.msk [vmem:[#allocation2 + $0x78] sm:$0xff] %vm216, %v174
    %228 = vst.msk [vmem:[#allocation2 + $0x80] sm:$0xff] %vm214, %v133
    %229 = vst.msk [vmem:[#allocation2 + $0x88] sm:$0xff] %vm216, %v175
    %230 = vst.msk [vmem:[#allocation2 + $0x90] sm:$0xff] %vm214, %v137
    %231 = vst.msk [vmem:[#allocation2 + $0x98] sm:$0xff] %vm216, %v176
    %232 = vst.msk [vmem:[#allocation2 + $0xa0] sm:$0xff] %vm214, %v141
    %233 = vst.msk [vmem:[#allocation2 + $0xa8] sm:$0xff] %vm216, %v177
    %234 = vst.msk [vmem:[#allocation2 + $0xb0] sm:$0xff] %vm214, %v145
    %235 = vst.msk [vmem:[#allocation2 + $0xb8] sm:$0xff] %vm216, %v178
    %236 = vst.msk [vmem:[#allocation2 + $0xc0] sm:$0xff] %vm214, %v149
    %237 = vst.msk [vmem:[#allocation2 + $0xc8] sm:$0xff] %vm216, %v179
    %238 = vst.msk [vmem:[#allocation2 + $0xd0] sm:$0xff] %vm214, %v153
    %239 = vst.msk [vmem:[#allocation2 + $0xd8] sm:$0xff] %vm216, %v180
    %240 = vst.msk [vmem:[#allocation2 + $0xe0] sm:$0xff] %vm214, %v157
    %241 = vst.msk [vmem:[#allocation2 + $0xe8] sm:$0xff] %vm216, %v181
    %242 = vst.msk [vmem:[#allocation2 + $0xf0] sm:$0xff] %vm214, %v161
    %243 = vst.msk [vmem:[#allocation2 + $0xf8] sm:$0xff] %vm216, %v182
    %244 = vst.msk [vmem:[#allocation2 + $0x100] sm:$0xff] %vm214, %v165
    %245 = vst.msk [vmem:[#allocation2 + $0x108] sm:$0xff] %vm216, %v183
    %v246 = vld [vmem:[#allocation2] sm:$0xff]
    %v247 = vld [vmem:[#allocation2 + $0x8] sm:$0xff]
    %v248 = vld [vmem:[#allocation2 + $0x10] sm:$0xff]
    %v249 = vld [vmem:[#allocation2 + $0x18] sm:$0xff]
    %v250 = vld [vmem:[#allocation2 + $0x20] sm:$0xff]
    %v251 = vld [vmem:[#allocation2 + $0x28] sm:$0xff]
    %v252 = vld [vmem:[#allocation2 + $0x30] sm:$0xff]
    %v253 = vld [vmem:[#allocation2 + $0x38] sm:$0xff]
    %v254 = vld [vmem:[#allocation2 + $0x40] sm:$0xff]
    %v255 = vld [vmem:[#allocation2 + $0x48] sm:$0xff]
    %v256 = vld [vmem:[#allocation2 + $0x50] sm:$0xff]
    %v257 = vld [vmem:[#allocation2 + $0x58] sm:$0xff]
    %v258 = vld [vmem:[#allocation2 + $0x60] sm:$0xff]
    %v259 = vld [vmem:[#allocation2 + $0x68] sm:$0xff]
    %v260 = vld [vmem:[#allocation2 + $0x70] sm:$0xff]
    %v261 = vld [vmem:[#allocation2 + $0x78] sm:$0xff]
    %v262 = vld [vmem:[#allocation2 + $0x80] sm:$0xff]
    %v263 = vld [vmem:[#allocation2 + $0x88] sm:$0xff]
    %v264 = vld [vmem:[#allocation2 + $0x90] sm:$0xff]
    %v265 = vld [vmem:[#allocation2 + $0x98] sm:$0xff]
    %v266 = vld [vmem:[#allocation2 + $0xa0] sm:$0xff]
    %v267 = vld [vmem:[#allocation2 + $0xa8] sm:$0xff]
    %v268 = vld [vmem:[#allocation2 + $0xb0] sm:$0xff]
    %v269 = vld [vmem:[#allocation2 + $0xb8] sm:$0xff]
    %v270 = vld [vmem:[#allocation2 + $0xc0] sm:$0xff]
    %v271 = vld [vmem:[#allocation2 + $0xc8] sm:$0xff]
    %v272 = vld [vmem:[#allocation2 + $0xd0] sm:$0xff]
    %v273 = vld [vmem:[#allocation2 + $0xd8] sm:$0xff]
    %v274 = vld [vmem:[#allocation2 + $0xe0] sm:$0xff]
    %v275 = vld [vmem:[#allocation2 + $0xe8] sm:$0xff]
    %v276 = vld [vmem:[#allocation2 + $0xf0] sm:$0xff]
    %v277 = vld [vmem:[#allocation2 + $0xf8] sm:$0xff]
    %v278 = vld [vmem:[#allocation2 + $0x100] sm:$0xff]
    %v279 = vld [vmem:[#allocation2 + $0x108] sm:$0xff]
    %v280 = vld [vmem:[#allocation2 + $0x110] sm:$0xff]
    %v281 = vld [vmem:[#allocation2 + $0x118] sm:$0xff]
    %282 = vrot.lane.b32.xlu0 %v246, 127
    %v283 = vpop.permute.xlu0 %282
    %284 = vrot.lane.b32.xlu0 %v248, 127
    %v285 = vpop.permute.xlu0 %284
    %286 = vrot.lane.b32.xlu0 %v250, 127
    %v287 = vpop.permute.xlu0 %286
    %288 = vrot.lane.b32.xlu0 %v252, 127
    %v289 = vpop.permute.xlu0 %288
    %290 = vrot.lane.b32.xlu0 %v254, 127
    %v291 = vpop.permute.xlu0 %290
    %292 = vrot.lane.b32.xlu0 %v256, 127
    %v293 = vpop.permute.xlu0 %292
    %294 = vrot.lane.b32.xlu0 %v258, 127
    %v295 = vpop.permute.xlu0 %294
    %296 = vrot.lane.b32.xlu0 %v260, 127
    %v297 = vpop.permute.xlu0 %296
    %298 = vrot.lane.b32.xlu0 %v262, 127
    %v299 = vpop.permute.xlu0 %298
    %300 = vrot.lane.b32.xlu0 %v264, 127
    %v301 = vpop.permute.xlu0 %300
    %302 = vrot.lane.b32.xlu0 %v266, 127
    %v303 = vpop.permute.xlu0 %302
    %304 = vrot.lane.b32.xlu0 %v268, 127
    %v305 = vpop.permute.xlu0 %304
    %306 = vrot.lane.b32.xlu0 %v270, 127
    %v307 = vpop.permute.xlu0 %306
    %308 = vrot.lane.b32.xlu0 %v272, 127
    %v309 = vpop.permute.xlu0 %308
    %310 = vrot.lane.b32.xlu0 %v274, 127
    %v311 = vpop.permute.xlu0 %310
    %312 = vrot.lane.b32.xlu0 %v276, 127
    %v313 = vpop.permute.xlu0 %312
    %314 = vrot.lane.b32.xlu0 %v278, 127
    %v315 = vpop.permute.xlu0 %314
    %316 = vrot.lane.b32.xlu0 %v280, 127
    %v317 = vpop.permute.xlu0 %316
    %318 = vrot.lane.b32.xlu0 %v247, 127
    %v319 = vpop.permute.xlu0 %318
    %320 = vrot.lane.b32.xlu0 %v249, 127
    %v321 = vpop.permute.xlu0 %320
    %322 = vrot.lane.b32.xlu0 %v251, 127
    %v323 = vpop.permute.xlu0 %322
    %324 = vrot.lane.b32.xlu0 %v253, 127
    %v325 = vpop.permute.xlu0 %324
    %326 = vrot.lane.b32.xlu0 %v255, 127
    %v327 = vpop.permute.xlu0 %326
    %328 = vrot.lane.b32.xlu0 %v257, 127
    %v329 = vpop.permute.xlu0 %328
    %330 = vrot.lane.b32.xlu0 %v259, 127
    %v331 = vpop.permute.xlu0 %330
    %332 = vrot.lane.b32.xlu0 %v261, 127
    %v333 = vpop.permute.xlu0 %332
    %334 = vrot.lane.b32.xlu0 %v263, 127
    %v335 = vpop.permute.xlu0 %334
    %336 = vrot.lane.b32.xlu0 %v265, 127
    %v337 = vpop.permute.xlu0 %336
    %338 = vrot.lane.b32.xlu0 %v267, 127
    %v339 = vpop.permute.xlu0 %338
    %340 = vrot.lane.b32.xlu0 %v269, 127
    %v341 = vpop.permute.xlu0 %340
    %342 = vrot.lane.b32.xlu0 %v271, 127
    %v343 = vpop.permute.xlu0 %342
    %344 = vrot.lane.b32.xlu0 %v273, 127
    %v345 = vpop.permute.xlu0 %344
    %346 = vrot.lane.b32.xlu0 %v275, 127
    %v347 = vpop.permute.xlu0 %346
    %348 = vrot.lane.b32.xlu0 %v277, 127
    %v349 = vpop.permute.xlu0 %348
    %350 = vrot.lane.b32.xlu0 %v279, 127
    %v351 = vpop.permute.xlu0 %350
    %352 = vrot.lane.b32.xlu0 %v281, 127
    %v353 = vpop.permute.xlu0 %352
    %v354 = vlaneseq
    %v355 = vand.u32 %v354, 127
    %vm356 = vcmp.lt.s32.totalorder %v355, 127
    %v357 = vsel %vm356, %v283, %v319
    %v358 = vsel %vm356, %v285, %v321
    %v359 = vsel %vm356, %v287, %v323
    %v360 = vsel %vm356, %v289, %v325
    %v361 = vsel %vm356, %v291, %v327
    %v362 = vsel %vm356, %v293, %v329
    %v363 = vsel %vm356, %v295, %v331
    %v364 = vsel %vm356, %v297, %v333
    %v365 = vsel %vm356, %v299, %v335
    %v366 = vsel %vm356, %v301, %v337
    %v367 = vsel %vm356, %v303, %v339
    %v368 = vsel %vm356, %v305, %v341
    %v369 = vsel %vm356, %v307, %v343
    %v370 = vsel %vm356, %v309, %v345
    %v371 = vsel %vm356, %v311, %v347
    %v372 = vsel %vm356, %v313, %v349
    %v373 = vsel %vm356, %v315, %v351
    %v374 = vsel %vm356, %v317, %v353
    %v375 = vsel %vm356, %v319, %v283
    %v376 = vsel %vm356, %v321, %v285
    %v377 = vsel %vm356, %v323, %v287
    %v378 = vsel %vm356, %v325, %v289
    %v379 = vsel %vm356, %v327, %v291
    %v380 = vsel %vm356, %v329, %v293
    %v381 = vsel %vm356, %v331, %v295
    %v382 = vsel %vm356, %v333, %v297
    %v383 = vsel %vm356, %v335, %v299
    %v384 = vsel %vm356, %v337, %v301
    %v385 = vsel %vm356, %v339, %v303
    %v386 = vsel %vm356, %v341, %v305
    %v387 = vsel %vm356, %v343, %v307
    %v388 = vsel %vm356, %v345, %v309
    %v389 = vsel %vm356, %v347, %v311
    %v390 = vsel %vm356, %v349, %v313
    %v391 = vsel %vm356, %v351, %v315
    %v392 = vsel %vm356, %v353, %v317
    %v393 = vmin.f32 %v246, %v357
    %v394 = vmin.f32 %v247, %v375
    %v395 = vmin.f32 %v248, %v358
    %v396 = vmin.f32 %v249, %v376
    %v397 = vmin.f32 %v250, %v359
    %v398 = vmin.f32 %v251, %v377
    %v399 = vmin.f32 %v252, %v360
    %v400 = vmin.f32 %v253, %v378
    %v401 = vmin.f32 %v254, %v361
    %v402 = vmin.f32 %v255, %v379
    %v403 = vmin.f32 %v256, %v362
    %v404 = vmin.f32 %v257, %v380
    %v405 = vmin.f32 %v258, %v363
    %v406 = vmin.f32 %v259, %v381
    %v407 = vmin.f32 %v260, %v364
    %v408 = vmin.f32 %v261, %v382
    %v409 = vmin.f32 %v262, %v365
    %v410 = vmin.f32 %v263, %v383
    %v411 = vmin.f32 %v264, %v366
    %v412 = vmin.f32 %v265, %v384
    %v413 = vmin.f32 %v266, %v367
    %v414 = vmin.f32 %v267, %v385
    %v415 = vmin.f32 %v268, %v368
    %v416 = vmin.f32 %v269, %v386
    %v417 = vmin.f32 %v270, %v369
    %v418 = vmin.f32 %v271, %v387
    %v419 = vmin.f32 %v272, %v370
    %v420 = vmin.f32 %v273, %v388
    %v421 = vmin.f32 %v274, %v371
    %v422 = vmin.f32 %v275, %v389
    %v423 = vmin.f32 %v276, %v372
    %v424 = vmin.f32 %v277, %v390
    %v425 = vmin.f32 %v278, %v373
    %v426 = vmin.f32 %v279, %v391
    %v427 = vmin.f32 %v280, %v374
    %v428 = vmin.f32 %v281, %v392
    %429 = vrot.lane.b32.xlu0 %v393, 126
    %v430 = vpop.permute.xlu0 %429
    %431 = vrot.lane.b32.xlu0 %v395, 126
    %v432 = vpop.permute.xlu0 %431
    %433 = vrot.lane.b32.xlu0 %v397, 126
    %v434 = vpop.permute.xlu0 %433
    %435 = vrot.lane.b32.xlu0 %v399, 126
    %v436 = vpop.permute.xlu0 %435
    %437 = vrot.lane.b32.xlu0 %v401, 126
    %v438 = vpop.permute.xlu0 %437
    %439 = vrot.lane.b32.xlu0 %v403, 126
    %v440 = vpop.permute.xlu0 %439
    %441 = vrot.lane.b32.xlu0 %v405, 126
    %v442 = vpop.permute.xlu0 %441
    %443 = vrot.lane.b32.xlu0 %v407, 126
    %v444 = vpop.permute.xlu0 %443
    %445 = vrot.lane.b32.xlu0 %v409, 126
    %v446 = vpop.permute.xlu0 %445
    %447 = vrot.lane.b32.xlu0 %v411, 126
    %v448 = vpop.permute.xlu0 %447
    %449 = vrot.lane.b32.xlu0 %v413, 126
    %v450 = vpop.permute.xlu0 %449
    %451 = vrot.lane.b32.xlu0 %v415, 126
    %v452 = vpop.permute.xlu0 %451
    %453 = vrot.lane.b32.xlu0 %v417, 126
    %v454 = vpop.permute.xlu0 %453
    %455 = vrot.lane.b32.xlu0 %v419, 126
    %v456 = vpop.permute.xlu0 %455
    %457 = vrot.lane.b32.xlu0 %v421, 126
    %v458 = vpop.permute.xlu0 %457
    %459 = vrot.lane.b32.xlu0 %v423, 126
    %v460 = vpop.permute.xlu0 %459
    %461 = vrot.lane.b32.xlu0 %v425, 126
    %v462 = vpop.permute.xlu0 %461
    %463 = vrot.lane.b32.xlu0 %v427, 126
    %v464 = vpop.permute.xlu0 %463
    %465 = vrot.lane.b32.xlu0 %v394, 126
    %v466 = vpop.permute.xlu0 %465
    %467 = vrot.lane.b32.xlu0 %v396, 126
    %v468 = vpop.permute.xlu0 %467
    %469 = vrot.lane.b32.xlu0 %v398, 126
    %v470 = vpop.permute.xlu0 %469
    %471 = vrot.lane.b32.xlu0 %v400, 126
    %v472 = vpop.permute.xlu0 %471
    %473 = vrot.lane.b32.xlu0 %v402, 126
    %v474 = vpop.permute.xlu0 %473
    %475 = vrot.lane.b32.xlu0 %v404, 126
    %v476 = vpop.permute.xlu0 %475
    %477 = vrot.lane.b32.xlu0 %v406, 126
    %v478 = vpop.permute.xlu0 %477
    %479 = vrot.lane.b32.xlu0 %v408, 126
    %v480 = vpop.permute.xlu0 %479
    %481 = vrot.lane.b32.xlu0 %v410, 126
    %v482 = vpop.permute.xlu0 %481
    %483 = vrot.lane.b32.xlu0 %v412, 126
    %v484 = vpop.permute.xlu0 %483
    %485 = vrot.lane.b32.xlu0 %v414, 126
    %v486 = vpop.permute.xlu0 %485
    %487 = vrot.lane.b32.xlu0 %v416, 126
    %v488 = vpop.permute.xlu0 %487
    %489 = vrot.lane.b32.xlu0 %v418, 126
    %v490 = vpop.permute.xlu0 %489
    %491 = vrot.lane.b32.xlu0 %v420, 126
    %v492 = vpop.permute.xlu0 %491
    %493 = vrot.lane.b32.xlu0 %v422, 126
    %v494 = vpop.permute.xlu0 %493
    %495 = vrot.lane.b32.xlu0 %v424, 126
    %v496 = vpop.permute.xlu0 %495
    %497 = vrot.lane.b32.xlu0 %v426, 126
    %v498 = vpop.permute.xlu0 %497
    %499 = vrot.lane.b32.xlu0 %v428, 126
    %v500 = vpop.permute.xlu0 %499
    %vm501 = vcmp.lt.s32.totalorder %v355, 126
    %v502 = vsel %vm501, %v430, %v466
    %v503 = vsel %vm501, %v432, %v468
    %v504 = vsel %vm501, %v434, %v470
    %v505 = vsel %vm501, %v436, %v472
    %v506 = vsel %vm501, %v438, %v474
    %v507 = vsel %vm501, %v440, %v476
    %v508 = vsel %vm501, %v442, %v478
    %v509 = vsel %vm501, %v444, %v480
    %v510 = vsel %vm501, %v446, %v482
    %v511 = vsel %vm501, %v448, %v484
    %v512 = vsel %vm501, %v450, %v486
    %v513 = vsel %vm501, %v452, %v488
    %v514 = vsel %vm501, %v454, %v490
    %v515 = vsel %vm501, %v456, %v492
    %v516 = vsel %vm501, %v458, %v494
    %v517 = vsel %vm501, %v460, %v496
    %v518 = vsel %vm501, %v462, %v498
    %v519 = vsel %vm501, %v464, %v500
    %v520 = vsel %vm501, %v466, %v430
    %v521 = vsel %vm501, %v468, %v432
    %v522 = vsel %vm501, %v470, %v434
    %v523 = vsel %vm501, %v472, %v436
    %v524 = vsel %vm501, %v474, %v438
    %v525 = vsel %vm501, %v476, %v440
    %v526 = vsel %vm501, %v478, %v442
    %v527 = vsel %vm501, %v480, %v444
    %v528 = vsel %vm501, %v482, %v446
    %v529 = vsel %vm501, %v484, %v448
    %v530 = vsel %vm501, %v486, %v450
    %v531 = vsel %vm501, %v488, %v452
    %v532 = vsel %vm501, %v490, %v454
    %v533 = vsel %vm501, %v492, %v456
    %v534 = vsel %vm501, %v494, %v458
    %v535 = vsel %vm501, %v496, %v460
    %v536 = vsel %vm501, %v498, %v462
    %v537 = vsel %vm501, %v500, %v464
    %v538 = vmin.f32 %v393, %v502
    %v539 = vmin.f32 %v394, %v520
    %v540 = vmin.f32 %v395, %v503
    %v541 = vmin.f32 %v396, %v521
    %v542 = vmin.f32 %v397, %v504
    %v543 = vmin.f32 %v398, %v522
    %v544 = vmin.f32 %v399, %v505
    %v545 = vmin.f32 %v400, %v523
    %v546 = vmin.f32 %v401, %v506
    %v547 = vmin.f32 %v402, %v524
    %v548 = vmin.f32 %v403, %v507
    %v549 = vmin.f32 %v404, %v525
    %v550 = vmin.f32 %v405, %v508
    %v551 = vmin.f32 %v406, %v526
    %v552 = vmin.f32 %v407, %v509
    %v553 = vmin.f32 %v408, %v527
    %v554 = vmin.f32 %v409, %v510
    %v555 = vmin.f32 %v410, %v528
    %v556 = vmin.f32 %v411, %v511
    %v557 = vmin.f32 %v412, %v529
    %v558 = vmin.f32 %v413, %v512
    %v559 = vmin.f32 %v414, %v530
    %v560 = vmin.f32 %v415, %v513
    %v561 = vmin.f32 %v416, %v531
    %v562 = vmin.f32 %v417, %v514
    %v563 = vmin.f32 %v418, %v532
    %v564 = vmin.f32 %v419, %v515
    %v565 = vmin.f32 %v420, %v533
    %v566 = vmin.f32 %v421, %v516
    %v567 = vmin.f32 %v422, %v534
    %v568 = vmin.f32 %v423, %v517
    %v569 = vmin.f32 %v424, %v535
    %v570 = vmin.f32 %v425, %v518
    %v571 = vmin.f32 %v426, %v536
    %v572 = vmin.f32 %v427, %v519
    %v573 = vmin.f32 %v428, %v537
    %574 = vrot.lane.b32.xlu0 %v538, 124
    %v575 = vpop.permute.xlu0 %574
    %576 = vrot.lane.b32.xlu0 %v540, 124
    %v577 = vpop.permute.xlu0 %576
    %578 = vrot.lane.b32.xlu0 %v542, 124
    %v579 = vpop.permute.xlu0 %578
    %580 = vrot.lane.b32.xlu0 %v544, 124
    %v581 = vpop.permute.xlu0 %580
    %582 = vrot.lane.b32.xlu0 %v546, 124
    %v583 = vpop.permute.xlu0 %582
    %584 = vrot.lane.b32.xlu0 %v548, 124
    %v585 = vpop.permute.xlu0 %584
    %586 = vrot.lane.b32.xlu0 %v550, 124
    %v587 = vpop.permute.xlu0 %586
    %588 = vrot.lane.b32.xlu0 %v552, 124
    %v589 = vpop.permute.xlu0 %588
    %590 = vrot.lane.b32.xlu0 %v554, 124
    %v591 = vpop.permute.xlu0 %590
    %592 = vrot.lane.b32.xlu0 %v556, 124
    %v593 = vpop.permute.xlu0 %592
    %594 = vrot.lane.b32.xlu0 %v558, 124
    %v595 = vpop.permute.xlu0 %594
    %596 = vrot.lane.b32.xlu0 %v560, 124
    %v597 = vpop.permute.xlu0 %596
    %598 = vrot.lane.b32.xlu0 %v562, 124
    %v599 = vpop.permute.xlu0 %598
    %600 = vrot.lane.b32.xlu0 %v564, 124
    %v601 = vpop.permute.xlu0 %600
    %602 = vrot.lane.b32.xlu0 %v566, 124
    %v603 = vpop.permute.xlu0 %602
    %604 = vrot.lane.b32.xlu0 %v568, 124
    %v605 = vpop.permute.xlu0 %604
    %606 = vrot.lane.b32.xlu0 %v570, 124
    %v607 = vpop.permute.xlu0 %606
    %608 = vrot.lane.b32.xlu0 %v572, 124
    %v609 = vpop.permute.xlu0 %608
    %610 = vrot.lane.b32.xlu0 %v539, 124
    %v611 = vpop.permute.xlu0 %610
    %612 = vrot.lane.b32.xlu0 %v541, 124
    %v613 = vpop.permute.xlu0 %612
    %614 = vrot.lane.b32.xlu0 %v543, 124
    %v615 = vpop.permute.xlu0 %614
    %616 = vrot.lane.b32.xlu0 %v545, 124
    %v617 = vpop.permute.xlu0 %616
    %618 = vrot.lane.b32.xlu0 %v547, 124
    %v619 = vpop.permute.xlu0 %618
    %620 = vrot.lane.b32.xlu0 %v549, 124
    %v621 = vpop.permute.xlu0 %620
    %622 = vrot.lane.b32.xlu0 %v551, 124
    %v623 = vpop.permute.xlu0 %622
    %624 = vrot.lane.b32.xlu0 %v553, 124
    %v625 = vpop.permute.xlu0 %624
    %626 = vrot.lane.b32.xlu0 %v555, 124
    %v627 = vpop.permute.xlu0 %626
    %628 = vrot.lane.b32.xlu0 %v557, 124
    %v629 = vpop.permute.xlu0 %628
    %630 = vrot.lane.b32.xlu0 %v559, 124
    %v631 = vpop.permute.xlu0 %630
    %632 = vrot.lane.b32.xlu0 %v561, 124
    %v633 = vpop.permute.xlu0 %632
    %634 = vrot.lane.b32.xlu0 %v563, 124
    %v635 = vpop.permute.xlu0 %634
    %636 = vrot.lane.b32.xlu0 %v565, 124
    %v637 = vpop.permute.xlu0 %636
    %638 = vrot.lane.b32.xlu0 %v567, 124
    %v639 = vpop.permute.xlu0 %638
    %640 = vrot.lane.b32.xlu0 %v569, 124
    %v641 = vpop.permute.xlu0 %640
    %642 = vrot.lane.b32.xlu0 %v571, 124
    %v643 = vpop.permute.xlu0 %642
    %644 = vrot.lane.b32.xlu0 %v573, 124
    %v645 = vpop.permute.xlu0 %644
    %vm646 = vcmp.lt.s32.totalorder %v355, 124
    %v647 = vsel %vm646, %v575, %v611
    %v648 = vsel %vm646, %v577, %v613
    %v649 = vsel %vm646, %v579, %v615
    %v650 = vsel %vm646, %v581, %v617
    %v651 = vsel %vm646, %v583, %v619
    %v652 = vsel %vm646, %v585, %v621
    %v653 = vsel %vm646, %v587, %v623
    %v654 = vsel %vm646, %v589, %v625
    %v655 = vsel %vm646, %v591, %v627
    %v656 = vsel %vm646, %v593, %v629
    %v657 = vsel %vm646, %v595, %v631
    %v658 = vsel %vm646, %v597, %v633
    %v659 = vsel %vm646, %v599, %v635
    %v660 = vsel %vm646, %v601, %v637
    %v661 = vsel %vm646, %v603, %v639
    %v662 = vsel %vm646, %v605, %v641
    %v663 = vsel %vm646, %v607, %v643
    %v664 = vsel %vm646, %v609, %v645
    %v665 = vsel %vm646, %v611, %v575
    %v666 = vsel %vm646, %v613, %v577
    %v667 = vsel %vm646, %v615, %v579
    %v668 = vsel %vm646, %v617, %v581
    %v669 = vsel %vm646, %v619, %v583
    %v670 = vsel %vm646, %v621, %v585
    %v671 = vsel %vm646, %v623, %v587
    %v672 = vsel %vm646, %v625, %v589
    %v673 = vsel %vm646, %v627, %v591
    %v674 = vsel %vm646, %v629, %v593
    %v675 = vsel %vm646, %v631, %v595
    %v676 = vsel %vm646, %v633, %v597
    %v677 = vsel %vm646, %v635, %v599
    %v678 = vsel %vm646, %v637, %v601
    %v679 = vsel %vm646, %v639, %v603
    %v680 = vsel %vm646, %v641, %v605
    %v681 = vsel %vm646, %v643, %v607
    %v682 = vsel %vm646, %v645, %v609
    %v683 = vmin.f32 %v538, %v647
    %v684 = vmin.f32 %v539, %v665
    %v685 = vmin.f32 %v540, %v648
    %v686 = vmin.f32 %v541, %v666
    %v687 = vmin.f32 %v542, %v649
    %v688 = vmin.f32 %v543, %v667
    %v689 = vmin.f32 %v544, %v650
    %v690 = vmin.f32 %v545, %v668
    %v691 = vmin.f32 %v546, %v651
    %v692 = vmin.f32 %v547, %v669
    %v693 = vmin.f32 %v548, %v652
    %v694 = vmin.f32 %v549, %v670
    %v695 = vmin.f32 %v550, %v653
    %v696 = vmin.f32 %v551, %v671
    %v697 = vmin.f32 %v552, %v654
    %v698 = vmin.f32 %v553, %v672
    %v699 = vmin.f32 %v554, %v655
    %v700 = vmin.f32 %v555, %v673
    %v701 = vmin.f32 %v556, %v656
    %v702 = vmin.f32 %v557, %v674
    %v703 = vmin.f32 %v558, %v657
    %v704 = vmin.f32 %v559, %v675
    %v705 = vmin.f32 %v560, %v658
    %v706 = vmin.f32 %v561, %v676
    %v707 = vmin.f32 %v562, %v659
    %v708 = vmin.f32 %v563, %v677
    %v709 = vmin.f32 %v564, %v660
    %v710 = vmin.f32 %v565, %v678
    %v711 = vmin.f32 %v566, %v661
    %v712 = vmin.f32 %v567, %v679
    %v713 = vmin.f32 %v568, %v662
    %v714 = vmin.f32 %v569, %v680
    %v715 = vmin.f32 %v570, %v663
    %v716 = vmin.f32 %v571, %v681
    %v717 = vmin.f32 %v572, %v664
    %v718 = vmin.f32 %v573, %v682
    %719 = vrot.lane.b32.xlu0 %v683, 123
    %v720 = vpop.permute.xlu0 %719
    %721 = vrot.lane.b32.xlu0 %v685, 123
    %v722 = vpop.permute.xlu0 %721
    %723 = vrot.lane.b32.xlu0 %v687, 123
    %v724 = vpop.permute.xlu0 %723
    %725 = vrot.lane.b32.xlu0 %v689, 123
    %v726 = vpop.permute.xlu0 %725
    %727 = vrot.lane.b32.xlu0 %v691, 123
    %v728 = vpop.permute.xlu0 %727
    %729 = vrot.lane.b32.xlu0 %v693, 123
    %v730 = vpop.permute.xlu0 %729
    %731 = vrot.lane.b32.xlu0 %v695, 123
    %v732 = vpop.permute.xlu0 %731
    %733 = vrot.lane.b32.xlu0 %v697, 123
    %v734 = vpop.permute.xlu0 %733
    %735 = vrot.lane.b32.xlu0 %v699, 123
    %v736 = vpop.permute.xlu0 %735
    %737 = vrot.lane.b32.xlu0 %v701, 123
    %v738 = vpop.permute.xlu0 %737
    %739 = vrot.lane.b32.xlu0 %v703, 123
    %v740 = vpop.permute.xlu0 %739
    %741 = vrot.lane.b32.xlu0 %v705, 123
    %v742 = vpop.permute.xlu0 %741
    %743 = vrot.lane.b32.xlu0 %v707, 123
    %v744 = vpop.permute.xlu0 %743
    %745 = vrot.lane.b32.xlu0 %v709, 123
    %v746 = vpop.permute.xlu0 %745
    %747 = vrot.lane.b32.xlu0 %v711, 123
    %v748 = vpop.permute.xlu0 %747
    %749 = vrot.lane.b32.xlu0 %v713, 123
    %v750 = vpop.permute.xlu0 %749
    %751 = vrot.lane.b32.xlu0 %v715, 123
    %v752 = vpop.permute.xlu0 %751
    %753 = vrot.lane.b32.xlu0 %v717, 123
    %v754 = vpop.permute.xlu0 %753
    %755 = vrot.lane.b32.xlu0 %v684, 123
    %v756 = vpop.permute.xlu0 %755
    %757 = vrot.lane.b32.xlu0 %v686, 123
    %v758 = vpop.permute.xlu0 %757
    %759 = vrot.lane.b32.xlu0 %v688, 123
    %v760 = vpop.permute.xlu0 %759
    %761 = vrot.lane.b32.xlu0 %v690, 123
    %v762 = vpop.permute.xlu0 %761
    %763 = vrot.lane.b32.xlu0 %v692, 123
    %v764 = vpop.permute.xlu0 %763
    %765 = vrot.lane.b32.xlu0 %v694, 123
    %v766 = vpop.permute.xlu0 %765
    %767 = vrot.lane.b32.xlu0 %v696, 123
    %v768 = vpop.permute.xlu0 %767
    %769 = vrot.lane.b32.xlu0 %v698, 123
    %v770 = vpop.permute.xlu0 %769
    %771 = vrot.lane.b32.xlu0 %v700, 123
    %v772 = vpop.permute.xlu0 %771
    %773 = vrot.lane.b32.xlu0 %v702, 123
    %v774 = vpop.permute.xlu0 %773
    %775 = vrot.lane.b32.xlu0 %v704, 123
    %v776 = vpop.permute.xlu0 %775
    %777 = vrot.lane.b32.xlu0 %v706, 123
    %v778 = vpop.permute.xlu0 %777
    %779 = vrot.lane.b32.xlu0 %v708, 123
    %v780 = vpop.permute.xlu0 %779
    %781 = vrot.lane.b32.xlu0 %v710, 123
    %v782 = vpop.permute.xlu0 %781
    %783 = vrot.lane.b32.xlu0 %v712, 123
    %v784 = vpop.permute.xlu0 %783
    %785 = vrot.lane.b32.xlu0 %v714, 123
    %v786 = vpop.permute.xlu0 %785
    %787 = vrot.lane.b32.xlu0 %v716, 123
    %v788 = vpop.permute.xlu0 %787
    %789 = vrot.lane.b32.xlu0 %v718, 123
    %v790 = vpop.permute.xlu0 %789
    %vm791 = vcmp.lt.s32.totalorder %v355, 123
    %v792 = vsel %vm791, %v720, %v756
    %v793 = vsel %vm791, %v722, %v758
    %v794 = vsel %vm791, %v724, %v760
    %v795 = vsel %vm791, %v726, %v762
    %v796 = vsel %vm791, %v728, %v764
    %v797 = vsel %vm791, %v730, %v766
    %v798 = vsel %vm791, %v732, %v768
    %v799 = vsel %vm791, %v734, %v770
    %v800 = vsel %vm791, %v736, %v772
    %v801 = vsel %vm791, %v738, %v774
    %v802 = vsel %vm791, %v740, %v776
    %v803 = vsel %vm791, %v742, %v778
    %v804 = vsel %vm791, %v744, %v780
    %v805 = vsel %vm791, %v746, %v782
    %v806 = vsel %vm791, %v748, %v784
    %v807 = vsel %vm791, %v750, %v786
    %v808 = vsel %vm791, %v752, %v788
    %v809 = vsel %vm791, %v754, %v790
    %v810 = vsel %vm791, %v756, %v720
    %v811 = vsel %vm791, %v758, %v722
    %v812 = vsel %vm791, %v760, %v724
    %v813 = vsel %vm791, %v762, %v726
    %v814 = vsel %vm791, %v764, %v728
    %v815 = vsel %vm791, %v766, %v730
    %v816 = vsel %vm791, %v768, %v732
    %v817 = vsel %vm791, %v770, %v734
    %v818 = vsel %vm791, %v772, %v736
    %v819 = vsel %vm791, %v774, %v738
    %v820 = vsel %vm791, %v776, %v740
    %v821 = vsel %vm791, %v778, %v742
    %v822 = vsel %vm791, %v780, %v744
    %v823 = vsel %vm791, %v782, %v746
    %v824 = vsel %vm791, %v784, %v748
    %v825 = vsel %vm791, %v786, %v750
    %v826 = vsel %vm791, %v788, %v752
    %v827 = vsel %vm791, %v790, %v754
    %v828 = vmin.f32 %v683, %v792
    %v829 = vmin.f32 %v684, %v810
    %v830 = vmin.f32 %v685, %v793
    %v831 = vmin.f32 %v686, %v811
    %v832 = vmin.f32 %v687, %v794
    %v833 = vmin.f32 %v688, %v812
    %v834 = vmin.f32 %v689, %v795
    %v835 = vmin.f32 %v690, %v813
    %v836 = vmin.f32 %v691, %v796
    %v837 = vmin.f32 %v692, %v814
    %v838 = vmin.f32 %v693, %v797
    %v839 = vmin.f32 %v694, %v815
    %v840 = vmin.f32 %v695, %v798
    %v841 = vmin.f32 %v696, %v816
    %v842 = vmin.f32 %v697, %v799
    %v843 = vmin.f32 %v698, %v817
    %v844 = vmin.f32 %v699, %v800
    %v845 = vmin.f32 %v700, %v818
    %v846 = vmin.f32 %v701, %v801
    %v847 = vmin.f32 %v702, %v819
    %v848 = vmin.f32 %v703, %v802
    %v849 = vmin.f32 %v704, %v820
    %v850 = vmin.f32 %v705, %v803
    %v851 = vmin.f32 %v706, %v821
    %v852 = vmin.f32 %v707, %v804
    %v853 = vmin.f32 %v708, %v822
    %v854 = vmin.f32 %v709, %v805
    %v855 = vmin.f32 %v710, %v823
    %v856 = vmin.f32 %v711, %v806
    %v857 = vmin.f32 %v712, %v824
    %v858 = vmin.f32 %v713, %v807
    %v859 = vmin.f32 %v714, %v825
    %v860 = vmin.f32 %v715, %v808
    %v861 = vmin.f32 %v716, %v826
    %v862 = vmin.f32 %v717, %v809
    %v863 = vmin.f32 %v718, %v827
    %v864 = vrot.slane %v828, 1
    %v865 = vrot.slane %v829, 1
    %v866 = vrot.slane %v830, 1
    %v867 = vrot.slane %v831, 1
    %v868 = vrot.slane %v832, 1
    %v869 = vrot.slane %v833, 1
    %v870 = vrot.slane %v834, 1
    %v871 = vrot.slane %v835, 1
    %v872 = vrot.slane %v836, 1
    %v873 = vrot.slane %v837, 1
    %v874 = vrot.slane %v838, 1
    %v875 = vrot.slane %v839, 1
    %v876 = vrot.slane %v840, 1
    %v877 = vrot.slane %v841, 1
    %v878 = vrot.slane %v842, 1
    %v879 = vrot.slane %v843, 1
    %v880 = vrot.slane %v844, 1
    %v881 = vrot.slane %v845, 1
    %v882 = vrot.slane %v846, 1
    %v883 = vrot.slane %v847, 1
    %v884 = vrot.slane %v848, 1
    %v885 = vrot.slane %v849, 1
    %v886 = vrot.slane %v850, 1
    %v887 = vrot.slane %v851, 1
    %v888 = vrot.slane %v852, 1
    %v889 = vrot.slane %v853, 1
    %v890 = vrot.slane %v854, 1
    %v891 = vrot.slane %v855, 1
    %v892 = vrot.slane %v856, 1
    %v893 = vrot.slane %v857, 1
    %v894 = vrot.slane %v858, 1
    %v895 = vrot.slane %v859, 1
    %v896 = vrot.slane %v860, 1
    %v897 = vrot.slane %v861, 1
    %v898 = vrot.slane %v862, 1
    %v899 = vrot.slane %v863, 1
    %v900 = vlaneseq
    %v901 = vshrl.u32 %v900, 7
    %vm902 = vcmp.lt.s32.totalorder %v901, 7
    %v903 = vsel %vm902, %v896, %v898
    %v904 = vsel %vm902, %v897, %v899
    %v905 = vsel %vm902, %v894, %v896
    %v906 = vsel %vm902, %v895, %v897
    %v907 = vsel %vm902, %v892, %v894
    %v908 = vsel %vm902, %v893, %v895
    %v909 = vsel %vm902, %v890, %v892
    %v910 = vsel %vm902, %v891, %v893
    %v911 = vsel %vm902, %v888, %v890
    %v912 = vsel %vm902, %v889, %v891
    %v913 = vsel %vm902, %v886, %v888
    %v914 = vsel %vm902, %v887, %v889
    %v915 = vsel %vm902, %v884, %v886
    %v916 = vsel %vm902, %v885, %v887
    %v917 = vsel %vm902, %v882, %v884
    %v918 = vsel %vm902, %v883, %v885
    %v919 = vsel %vm902, %v880, %v882
    %v920 = vsel %vm902, %v881, %v883
    %v921 = vsel %vm902, %v878, %v880
    %v922 = vsel %vm902, %v879, %v881
    %v923 = vsel %vm902, %v876, %v878
    %v924 = vsel %vm902, %v877, %v879
    %v925 = vsel %vm902, %v874, %v876
    %v926 = vsel %vm902, %v875, %v877
    %v927 = vsel %vm902, %v872, %v874
    %v928 = vsel %vm902, %v873, %v875
    %v929 = vsel %vm902, %v870, %v872
    %v930 = vsel %vm902, %v871, %v873
    %v931 = vsel %vm902, %v868, %v870
    %v932 = vsel %vm902, %v869, %v871
    %v933 = vsel %vm902, %v866, %v868
    %v934 = vsel %vm902, %v867, %v869
    %v935 = vsel %vm902, %v864, %v866
    %v936 = vsel %vm902, %v865, %v867
    %v937 = vsel %vm902, %v898, %v864
    %v938 = vsel %vm902, %v899, %v865
    %v939 = vmin.f32 %v828, %v935
    %v940 = vmin.f32 %v829, %v936
    %v941 = vmin.f32 %v830, %v933
    %v942 = vmin.f32 %v831, %v934
    %v943 = vmin.f32 %v832, %v931
    %v944 = vmin.f32 %v833, %v932
    %v945 = vmin.f32 %v834, %v929
    %v946 = vmin.f32 %v835, %v930
    %v947 = vmin.f32 %v836, %v927
    %v948 = vmin.f32 %v837, %v928
    %v949 = vmin.f32 %v838, %v925
    %v950 = vmin.f32 %v839, %v926
    %v951 = vmin.f32 %v840, %v923
    %v952 = vmin.f32 %v841, %v924
    %v953 = vmin.f32 %v842, %v921
    %v954 = vmin.f32 %v843, %v922
    %v955 = vmin.f32 %v844, %v919
    %v956 = vmin.f32 %v845, %v920
    %v957 = vmin.f32 %v846, %v917
    %v958 = vmin.f32 %v847, %v918
    %v959 = vmin.f32 %v848, %v915
    %v960 = vmin.f32 %v849, %v916
    %v961 = vmin.f32 %v850, %v913
    %v962 = vmin.f32 %v851, %v914
    %v963 = vmin.f32 %v852, %v911
    %v964 = vmin.f32 %v853, %v912
    %v965 = vmin.f32 %v854, %v909
    %v966 = vmin.f32 %v855, %v910
    %v967 = vmin.f32 %v856, %v907
    %v968 = vmin.f32 %v857, %v908
    %v969 = vmin.f32 %v858, %v905
    %v970 = vmin.f32 %v859, %v906
    %v971 = vmin.f32 %v860, %v903
    %v972 = vmin.f32 %v861, %v904
    %v973 = vmin.f32 %v862, %v937
    %v974 = vmin.f32 %v863, %v938
    %v975 = vrot.slane %v939, 2
    %v976 = vrot.slane %v940, 2
    %v977 = vrot.slane %v941, 2
    %v978 = vrot.slane %v942, 2
    %v979 = vrot.slane %v943, 2
    %v980 = vrot.slane %v944, 2
    %v981 = vrot.slane %v945, 2
    %v982 = vrot.slane %v946, 2
    %v983 = vrot.slane %v947, 2
    %v984 = vrot.slane %v948, 2
    %v985 = vrot.slane %v949, 2
    %v986 = vrot.slane %v950, 2
    %v987 = vrot.slane %v951, 2
    %v988 = vrot.slane %v952, 2
    %v989 = vrot.slane %v953, 2
    %v990 = vrot.slane %v954, 2
    %v991 = vrot.slane %v955, 2
    %v992 = vrot.slane %v956, 2
    %v993 = vrot.slane %v957, 2
    %v994 = vrot.slane %v958, 2
    %v995 = vrot.slane %v959, 2
    %v996 = vrot.slane %v960, 2
    %v997 = vrot.slane %v961, 2
    %v998 = vrot.slane %v962, 2
    %v999 = vrot.slane %v963, 2
    %v1000 = vrot.slane %v964, 2
    %v1001 = vrot.slane %v965, 2
    %v1002 = vrot.slane %v966, 2
    %v1003 = vrot.slane %v967, 2
    %v1004 = vrot.slane %v968, 2
    %v1005 = vrot.slane %v969, 2
    %v1006 = vrot.slane %v970, 2
    %v1007 = vrot.slane %v971, 2
    %v1008 = vrot.slane %v972, 2
    %v1009 = vrot.slane %v973, 2
    %v1010 = vrot.slane %v974, 2
    %vm1011 = vcmp.lt.s32.totalorder %v901, 6
    %v1012 = vsel %vm1011, %v1007, %v1009
    %v1013 = vsel %vm1011, %v1008, %v1010
    %v1014 = vsel %vm1011, %v1005, %v1007
    %v1015 = vsel %vm1011, %v1006, %v1008
    %v1016 = vsel %vm1011, %v1003, %v1005
    %v1017 = vsel %vm1011, %v1004, %v1006
    %v1018 = vsel %vm1011, %v1001, %v1003
    %v1019 = vsel %vm1011, %v1002, %v1004
    %v1020 = vsel %vm1011, %v999, %v1001
    %v1021 = vsel %vm1011, %v1000, %v1002
    %v1022 = vsel %vm1011, %v997, %v999
    %v1023 = vsel %vm1011, %v998, %v1000
    %v1024 = vsel %vm1011, %v995, %v997
    %v1025 = vsel %vm1011, %v996, %v998
    %v1026 = vsel %vm1011, %v993, %v995
    %v1027 = vsel %vm1011, %v994, %v996
    %v1028 = vsel %vm1011, %v991, %v993
    %v1029 = vsel %vm1011, %v992, %v994
    %v1030 = vsel %vm1011, %v989, %v991
    %v1031 = vsel %vm1011, %v990, %v992
    %v1032 = vsel %vm1011, %v987, %v989
    %v1033 = vsel %vm1011, %v988, %v990
    %v1034 = vsel %vm1011, %v985, %v987
    %v1035 = vsel %vm1011, %v986, %v988
    %v1036 = vsel %vm1011, %v983, %v985
    %v1037 = vsel %vm1011, %v984, %v986
    %v1038 = vsel %vm1011, %v981, %v983
    %v1039 = vsel %vm1011, %v982, %v984
    %v1040 = vsel %vm1011, %v979, %v981
    %v1041 = vsel %vm1011, %v980, %v982
    %v1042 = vsel %vm1011, %v977, %v979
    %v1043 = vsel %vm1011, %v978, %v980
    %v1044 = vsel %vm1011, %v975, %v977
    %v1045 = vsel %vm1011, %v976, %v978
    %v1046 = vsel %vm1011, %v1009, %v975
    %v1047 = vsel %vm1011, %v1010, %v976
    %v1048 = vmin.f32 %v939, %v1044
    %v1049 = vmin.f32 %v940, %v1045
    %v1050 = vmin.f32 %v941, %v1042
    %v1051 = vmin.f32 %v942, %v1043
    %v1052 = vmin.f32 %v943, %v1040
    %v1053 = vmin.f32 %v944, %v1041
    %v1054 = vmin.f32 %v945, %v1038
    %v1055 = vmin.f32 %v946, %v1039
    %v1056 = vmin.f32 %v947, %v1036
    %v1057 = vmin.f32 %v948, %v1037
    %v1058 = vmin.f32 %v949, %v1034
    %v1059 = vmin.f32 %v950, %v1035
    %v1060 = vmin.f32 %v951, %v1032
    %v1061 = vmin.f32 %v952, %v1033
    %v1062 = vmin.f32 %v953, %v1030
    %v1063 = vmin.f32 %v954, %v1031
    %v1064 = vmin.f32 %v955, %v1028
    %v1065 = vmin.f32 %v956, %v1029
    %v1066 = vmin.f32 %v957, %v1026
    %v1067 = vmin.f32 %v958, %v1027
    %v1068 = vmin.f32 %v959, %v1024
    %v1069 = vmin.f32 %v960, %v1025
    %v1070 = vmin.f32 %v961, %v1022
    %v1071 = vmin.f32 %v962, %v1023
    %v1072 = vmin.f32 %v963, %v1020
    %v1073 = vmin.f32 %v964, %v1021
    %v1074 = vmin.f32 %v965, %v1018
    %v1075 = vmin.f32 %v966, %v1019
    %v1076 = vmin.f32 %v967, %v1016
    %v1077 = vmin.f32 %v968, %v1017
    %v1078 = vmin.f32 %v969, %v1014
    %v1079 = vmin.f32 %v970, %v1015
    %v1080 = vmin.f32 %v971, %v1012
    %v1081 = vmin.f32 %v972, %v1013
    %v1082 = vmin.f32 %v973, %v1046
    %v1083 = vmin.f32 %v974, %v1047
    %v1084 = vrot.slane %v1048, 4
    %v1085 = vrot.slane %v1049, 4
    %v1086 = vrot.slane %v1050, 4
    %v1087 = vrot.slane %v1051, 4
    %v1088 = vrot.slane %v1052, 4
    %v1089 = vrot.slane %v1053, 4
    %v1090 = vrot.slane %v1054, 4
    %v1091 = vrot.slane %v1055, 4
    %v1092 = vrot.slane %v1056, 4
    %v1093 = vrot.slane %v1057, 4
    %v1094 = vrot.slane %v1058, 4
    %v1095 = vrot.slane %v1059, 4
    %v1096 = vrot.slane %v1060, 4
    %v1097 = vrot.slane %v1061, 4
    %v1098 = vrot.slane %v1062, 4
    %v1099 = vrot.slane %v1063, 4
    %v1100 = vrot.slane %v1064, 4
    %v1101 = vrot.slane %v1065, 4
    %v1102 = vrot.slane %v1066, 4
    %v1103 = vrot.slane %v1067, 4
    %v1104 = vrot.slane %v1068, 4
    %v1105 = vrot.slane %v1069, 4
    %v1106 = vrot.slane %v1070, 4
    %v1107 = vrot.slane %v1071, 4
    %v1108 = vrot.slane %v1072, 4
    %v1109 = vrot.slane %v1073, 4
    %v1110 = vrot.slane %v1074, 4
    %v1111 = vrot.slane %v1075, 4
    %v1112 = vrot.slane %v1076, 4
    %v1113 = vrot.slane %v1077, 4
    %v1114 = vrot.slane %v1078, 4
    %v1115 = vrot.slane %v1079, 4
    %v1116 = vrot.slane %v1080, 4
    %v1117 = vrot.slane %v1081, 4
    %v1118 = vrot.slane %v1082, 4
    %v1119 = vrot.slane %v1083, 4
    %vm1120 = vcmp.lt.s32.totalorder %v901, 4
    %v1121 = vsel %vm1120, %v1116, %v1118
    %v1122 = vsel %vm1120, %v1117, %v1119
    %v1123 = vsel %vm1120, %v1114, %v1116
    %v1124 = vsel %vm1120, %v1115, %v1117
    %v1125 = vsel %vm1120, %v1112, %v1114
    %v1126 = vsel %vm1120, %v1113, %v1115
    %v1127 = vsel %vm1120, %v1110, %v1112
    %v1128 = vsel %vm1120, %v1111, %v1113
    %v1129 = vsel %vm1120, %v1108, %v1110
    %v1130 = vsel %vm1120, %v1109, %v1111
    %v1131 = vsel %vm1120, %v1106, %v1108
    %v1132 = vsel %vm1120, %v1107, %v1109
    %v1133 = vsel %vm1120, %v1104, %v1106
    %v1134 = vsel %vm1120, %v1105, %v1107
    %v1135 = vsel %vm1120, %v1102, %v1104
    %v1136 = vsel %vm1120, %v1103, %v1105
    %v1137 = vsel %vm1120, %v1100, %v1102
    %v1138 = vsel %vm1120, %v1101, %v1103
    %v1139 = vsel %vm1120, %v1098, %v1100
    %v1140 = vsel %vm1120, %v1099, %v1101
    %v1141 = vsel %vm1120, %v1096, %v1098
    %v1142 = vsel %vm1120, %v1097, %v1099
    %v1143 = vsel %vm1120, %v1094, %v1096
    %v1144 = vsel %vm1120, %v1095, %v1097
    %v1145 = vsel %vm1120, %v1092, %v1094
    %v1146 = vsel %vm1120, %v1093, %v1095
    %v1147 = vsel %vm1120, %v1090, %v1092
    %v1148 = vsel %vm1120, %v1091, %v1093
    %v1149 = vsel %vm1120, %v1088, %v1090
    %v1150 = vsel %vm1120, %v1089, %v1091
    %v1151 = vsel %vm1120, %v1086, %v1088
    %v1152 = vsel %vm1120, %v1087, %v1089
    %v1153 = vsel %vm1120, %v1084, %v1086
    %v1154 = vsel %vm1120, %v1085, %v1087
    %v1155 = vsel %vm1120, %v1118, %v1084
    %v1156 = vsel %vm1120, %v1119, %v1085
    %v1157 = vmin.f32 %v1048, %v1153
    %v1158 = vmin.f32 %v1049, %v1154
    %v1159 = vmin.f32 %v1050, %v1151
    %v1160 = vmin.f32 %v1051, %v1152
    %v1161 = vmin.f32 %v1052, %v1149
    %v1162 = vmin.f32 %v1053, %v1150
    %v1163 = vmin.f32 %v1054, %v1147
    %v1164 = vmin.f32 %v1055, %v1148
    %v1165 = vmin.f32 %v1056, %v1145
    %v1166 = vmin.f32 %v1057, %v1146
    %v1167 = vmin.f32 %v1058, %v1143
    %v1168 = vmin.f32 %v1059, %v1144
    %v1169 = vmin.f32 %v1060, %v1141
    %v1170 = vmin.f32 %v1061, %v1142
    %v1171 = vmin.f32 %v1062, %v1139
    %v1172 = vmin.f32 %v1063, %v1140
    %v1173 = vmin.f32 %v1064, %v1137
    %v1174 = vmin.f32 %v1065, %v1138
    %v1175 = vmin.f32 %v1066, %v1135
    %v1176 = vmin.f32 %v1067, %v1136
    %v1177 = vmin.f32 %v1068, %v1133
    %v1178 = vmin.f32 %v1069, %v1134
    %v1179 = vmin.f32 %v1070, %v1131
    %v1180 = vmin.f32 %v1071, %v1132
    %v1181 = vmin.f32 %v1072, %v1129
    %v1182 = vmin.f32 %v1073, %v1130
    %v1183 = vmin.f32 %v1074, %v1127
    %v1184 = vmin.f32 %v1075, %v1128
    %v1185 = vmin.f32 %v1076, %v1125
    %v1186 = vmin.f32 %v1077, %v1126
    %v1187 = vmin.f32 %v1078, %v1123
    %v1188 = vmin.f32 %v1079, %v1124
    %v1189 = vmin.f32 %v1080, %v1121
    %v1190 = vmin.f32 %v1081, %v1122
    %v1191 = vmin.f32 %v1082, %v1155
    %v1192 = vmin.f32 %v1083, %v1156
    %v1193 = vrot.slane %v1157, 5
    %v1194 = vrot.slane %v1158, 5
    %v1195 = vrot.slane %v1159, 5
    %v1196 = vrot.slane %v1160, 5
    %v1197 = vrot.slane %v1161, 5
    %v1198 = vrot.slane %v1162, 5
    %v1199 = vrot.slane %v1163, 5
    %v1200 = vrot.slane %v1164, 5
    %v1201 = vrot.slane %v1165, 5
    %v1202 = vrot.slane %v1166, 5
    %v1203 = vrot.slane %v1167, 5
    %v1204 = vrot.slane %v1168, 5
    %v1205 = vrot.slane %v1169, 5
    %v1206 = vrot.slane %v1170, 5
    %v1207 = vrot.slane %v1171, 5
    %v1208 = vrot.slane %v1172, 5
    %v1209 = vrot.slane %v1173, 5
    %v1210 = vrot.slane %v1174, 5
    %v1211 = vrot.slane %v1175, 5
    %v1212 = vrot.slane %v1176, 5
    %v1213 = vrot.slane %v1177, 5
    %v1214 = vrot.slane %v1178, 5
    %v1215 = vrot.slane %v1179, 5
    %v1216 = vrot.slane %v1180, 5
    %v1217 = vrot.slane %v1181, 5
    %v1218 = vrot.slane %v1182, 5
    %v1219 = vrot.slane %v1183, 5
    %v1220 = vrot.slane %v1184, 5
    %v1221 = vrot.slane %v1185, 5
    %v1222 = vrot.slane %v1186, 5
    %v1223 = vrot.slane %v1187, 5
    %v1224 = vrot.slane %v1188, 5
    %v1225 = vrot.slane %v1189, 5
    %v1226 = vrot.slane %v1190, 5
    %v1227 = vrot.slane %v1191, 5
    %v1228 = vrot.slane %v1192, 5
    %vm1229 = vcmp.lt.s32.totalorder %v901, 3
    %v1230 = vsel %vm1229, %v1225, %v1227
    %v1231 = vsel %vm1229, %v1226, %v1228
    %v1232 = vsel %vm1229, %v1223, %v1225
    %v1233 = vsel %vm1229, %v1224, %v1226
    %v1234 = vsel %vm1229, %v1221, %v1223
    %v1235 = vsel %vm1229, %v1222, %v1224
    %v1236 = vsel %vm1229, %v1219, %v1221
    %v1237 = vsel %vm1229, %v1220, %v1222
    %v1238 = vsel %vm1229, %v1217, %v1219
    %v1239 = vsel %vm1229, %v1218, %v1220
    %v1240 = vsel %vm1229, %v1215, %v1217
    %v1241 = vsel %vm1229, %v1216, %v1218
    %v1242 = vsel %vm1229, %v1213, %v1215
    %v1243 = vsel %vm1229, %v1214, %v1216
    %v1244 = vsel %vm1229, %v1211, %v1213
    %v1245 = vsel %vm1229, %v1212, %v1214
    %v1246 = vsel %vm1229, %v1209, %v1211
    %v1247 = vsel %vm1229, %v1210, %v1212
    %v1248 = vsel %vm1229, %v1207, %v1209
    %v1249 = vsel %vm1229, %v1208, %v1210
    %v1250 = vsel %vm1229, %v1205, %v1207
    %v1251 = vsel %vm1229, %v1206, %v1208
    %v1252 = vsel %vm1229, %v1203, %v1205
    %v1253 = vsel %vm1229, %v1204, %v1206
    %v1254 = vsel %vm1229, %v1201, %v1203
    %v1255 = vsel %vm1229, %v1202, %v1204
    %v1256 = vsel %vm1229, %v1199, %v1201
    %v1257 = vsel %vm1229, %v1200, %v1202
    %v1258 = vsel %vm1229, %v1197, %v1199
    %v1259 = vsel %vm1229, %v1198, %v1200
    %v1260 = vsel %vm1229, %v1195, %v1197
    %v1261 = vsel %vm1229, %v1196, %v1198
    %v1262 = vsel %vm1229, %v1193, %v1195
    %v1263 = vsel %vm1229, %v1194, %v1196
    %v1264 = vsel %vm1229, %v1227, %v1193
    %v1265 = vsel %vm1229, %v1228, %v1194
    %v1266 = vmin.f32 %v1157, %v1262
    %v1267 = vmin.f32 %v1158, %v1263
    %v1268 = vmin.f32 %v1159, %v1260
    %v1269 = vmin.f32 %v1160, %v1261
    %v1270 = vmin.f32 %v1161, %v1258
    %v1271 = vmin.f32 %v1162, %v1259
    %v1272 = vmin.f32 %v1163, %v1256
    %v1273 = vmin.f32 %v1164, %v1257
    %v1274 = vmin.f32 %v1165, %v1254
    %v1275 = vmin.f32 %v1166, %v1255
    %v1276 = vmin.f32 %v1167, %v1252
    %v1277 = vmin.f32 %v1168, %v1253
    %v1278 = vmin.f32 %v1169, %v1250
    %v1279 = vmin.f32 %v1170, %v1251
    %v1280 = vmin.f32 %v1171, %v1248
    %v1281 = vmin.f32 %v1172, %v1249
    %v1282 = vmin.f32 %v1173, %v1246
    %v1283 = vmin.f32 %v1174, %v1247
    %v1284 = vmin.f32 %v1175, %v1244
    %v1285 = vmin.f32 %v1176, %v1245
    %v1286 = vmin.f32 %v1177, %v1242
    %v1287 = vmin.f32 %v1178, %v1243
    %v1288 = vmin.f32 %v1179, %v1240
    %v1289 = vmin.f32 %v1180, %v1241
    %v1290 = vmin.f32 %v1181, %v1238
    %v1291 = vmin.f32 %v1182, %v1239
    %v1292 = vmin.f32 %v1183, %v1236
    %v1293 = vmin.f32 %v1184, %v1237
    %v1294 = vmin.f32 %v1185, %v1234
    %v1295 = vmin.f32 %v1186, %v1235
    %v1296 = vmin.f32 %v1187, %v1232
    %v1297 = vmin.f32 %v1188, %v1233
    %v1298 = vmin.f32 %v1189, %v1230
    %v1299 = vmin.f32 %v1190, %v1231
    %v1300 = vmin.f32 %v1191, %v1264
    %v1301 = vmin.f32 %v1192, %v1265
    %1302 = vrot.lane.b32.xlu0 %v1266, 127
    %v1303 = vpop.permute.xlu0 %1302
    %1304 = vrot.lane.b32.xlu0 %v1268, 127
    %v1305 = vpop.permute.xlu0 %1304
    %1306 = vrot.lane.b32.xlu0 %v1270, 127
    %v1307 = vpop.permute.xlu0 %1306
    %1308 = vrot.lane.b32.xlu0 %v1272, 127
    %v1309 = vpop.permute.xlu0 %1308
    %1310 = vrot.lane.b32.xlu0 %v1274, 127
    %v1311 = vpop.permute.xlu0 %1310
    %1312 = vrot.lane.b32.xlu0 %v1276, 127
    %v1313 = vpop.permute.xlu0 %1312
    %1314 = vrot.lane.b32.xlu0 %v1278, 127
    %v1315 = vpop.permute.xlu0 %1314
    %1316 = vrot.lane.b32.xlu0 %v1280, 127
    %v1317 = vpop.permute.xlu0 %1316
    %1318 = vrot.lane.b32.xlu0 %v1282, 127
    %v1319 = vpop.permute.xlu0 %1318
    %1320 = vrot.lane.b32.xlu0 %v1284, 127
    %v1321 = vpop.permute.xlu0 %1320
    %1322 = vrot.lane.b32.xlu0 %v1286, 127
    %v1323 = vpop.permute.xlu0 %1322
    %1324 = vrot.lane.b32.xlu0 %v1288, 127
    %v1325 = vpop.permute.xlu0 %1324
    %1326 = vrot.lane.b32.xlu0 %v1290, 127
    %v1327 = vpop.permute.xlu0 %1326
    %1328 = vrot.lane.b32.xlu0 %v1292, 127
    %v1329 = vpop.permute.xlu0 %1328
    %1330 = vrot.lane.b32.xlu0 %v1294, 127
    %v1331 = vpop.permute.xlu0 %1330
    %1332 = vrot.lane.b32.xlu0 %v1296, 127
    %v1333 = vpop.permute.xlu0 %1332
    %1334 = vrot.lane.b32.xlu0 %v1298, 127
    %v1335 = vpop.permute.xlu0 %1334
    %1336 = vrot.lane.b32.xlu0 %v1300, 127
    %v1337 = vpop.permute.xlu0 %1336
    %1338 = vrot.lane.b32.xlu0 %v1267, 127
    %v1339 = vpop.permute.xlu0 %1338
    %1340 = vrot.lane.b32.xlu0 %v1269, 127
    %v1341 = vpop.permute.xlu0 %1340
    %1342 = vrot.lane.b32.xlu0 %v1271, 127
    %v1343 = vpop.permute.xlu0 %1342
    %1344 = vrot.lane.b32.xlu0 %v1273, 127
    %v1345 = vpop.permute.xlu0 %1344
    %1346 = vrot.lane.b32.xlu0 %v1275, 127
    %v1347 = vpop.permute.xlu0 %1346
    %1348 = vrot.lane.b32.xlu0 %v1277, 127
    %v1349 = vpop.permute.xlu0 %1348
    %1350 = vrot.lane.b32.xlu0 %v1279, 127
    %v1351 = vpop.permute.xlu0 %1350
    %1352 = vrot.lane.b32.xlu0 %v1281, 127
    %v1353 = vpop.permute.xlu0 %1352
    %1354 = vrot.lane.b32.xlu0 %v1283, 127
    %v1355 = vpop.permute.xlu0 %1354
    %1356 = vrot.lane.b32.xlu0 %v1285, 127
    %v1357 = vpop.permute.xlu0 %1356
    %1358 = vrot.lane.b32.xlu0 %v1287, 127
    %v1359 = vpop.permute.xlu0 %1358
    %1360 = vrot.lane.b32.xlu0 %v1289, 127
    %v1361 = vpop.permute.xlu0 %1360
    %1362 = vrot.lane.b32.xlu0 %v1291, 127
    %v1363 = vpop.permute.xlu0 %1362
    %1364 = vrot.lane.b32.xlu0 %v1293, 127
    %v1365 = vpop.permute.xlu0 %1364
    %1366 = vrot.lane.b32.xlu0 %v1295, 127
    %v1367 = vpop.permute.xlu0 %1366
    %1368 = vrot.lane.b32.xlu0 %v1297, 127
    %v1369 = vpop.permute.xlu0 %1368
    %1370 = vrot.lane.b32.xlu0 %v1299, 127
    %v1371 = vpop.permute.xlu0 %1370
    %1372 = vrot.lane.b32.xlu0 %v1301, 127
    %v1373 = vpop.permute.xlu0 %1372
    %v1374 = vsel %vm356, %v1303, %v1339
    %v1375 = vsel %vm356, %v1305, %v1341
    %v1376 = vsel %vm356, %v1307, %v1343
    %v1377 = vsel %vm356, %v1309, %v1345
    %v1378 = vsel %vm356, %v1311, %v1347
    %v1379 = vsel %vm356, %v1313, %v1349
    %v1380 = vsel %vm356, %v1315, %v1351
    %v1381 = vsel %vm356, %v1317, %v1353
    %v1382 = vsel %vm356, %v1319, %v1355
    %v1383 = vsel %vm356, %v1321, %v1357
    %v1384 = vsel %vm356, %v1323, %v1359
    %v1385 = vsel %vm356, %v1325, %v1361
    %v1386 = vsel %vm356, %v1327, %v1363
    %v1387 = vsel %vm356, %v1329, %v1365
    %v1388 = vsel %vm356, %v1331, %v1367
    %v1389 = vsel %vm356, %v1333, %v1369
    %v1390 = vsel %vm356, %v1335, %v1371
    %v1391 = vsel %vm356, %v1337, %v1373
    %v1392 = vsel %vm356, %v1339, %v1303
    %v1393 = vsel %vm356, %v1341, %v1305
    %v1394 = vsel %vm356, %v1343, %v1307
    %v1395 = vsel %vm356, %v1345, %v1309
    %v1396 = vsel %vm356, %v1347, %v1311
    %v1397 = vsel %vm356, %v1349, %v1313
    %v1398 = vsel %vm356, %v1351, %v1315
    %v1399 = vsel %vm356, %v1353, %v1317
    %v1400 = vsel %vm356, %v1355, %v1319
    %v1401 = vsel %vm356, %v1357, %v1321
    %v1402 = vsel %vm356, %v1359, %v1323
    %v1403 = vsel %vm356, %v1361, %v1325
    %v1404 = vsel %vm356, %v1363, %v1327
    %v1405 = vsel %vm356, %v1365, %v1329
    %v1406 = vsel %vm356, %v1367, %v1331
    %v1407 = vsel %vm356, %v1369, %v1333
    %v1408 = vsel %vm356, %v1371, %v1335
    %v1409 = vsel %vm356, %v1373, %v1337
    %v1410 = vmax.f32 %v1266, %v1374
    %v1411 = vmax.f32 %v1267, %v1392
    %v1412 = vmax.f32 %v1268, %v1375
    %v1413 = vmax.f32 %v1269, %v1393
    %v1414 = vmax.f32 %v1270, %v1376
    %v1415 = vmax.f32 %v1271, %v1394
    %v1416 = vmax.f32 %v1272, %v1377
    %v1417 = vmax.f32 %v1273, %v1395
    %v1418 = vmax.f32 %v1274, %v1378
    %v1419 = vmax.f32 %v1275, %v1396
    %v1420 = vmax.f32 %v1276, %v1379
    %v1421 = vmax.f32 %v1277, %v1397
    %v1422 = vmax.f32 %v1278, %v1380
    %v1423 = vmax.f32 %v1279, %v1398
    %v1424 = vmax.f32 %v1280, %v1381
    %v1425 = vmax.f32 %v1281, %v1399
    %v1426 = vmax.f32 %v1282, %v1382
    %v1427 = vmax.f32 %v1283, %v1400
    %v1428 = vmax.f32 %v1284, %v1383
    %v1429 = vmax.f32 %v1285, %v1401
    %v1430 = vmax.f32 %v1286, %v1384
    %v1431 = vmax.f32 %v1287, %v1402
    %v1432 = vmax.f32 %v1288, %v1385
    %v1433 = vmax.f32 %v1289, %v1403
    %v1434 = vmax.f32 %v1290, %v1386
    %v1435 = vmax.f32 %v1291, %v1404
    %v1436 = vmax.f32 %v1292, %v1387
    %v1437 = vmax.f32 %v1293, %v1405
    %v1438 = vmax.f32 %v1294, %v1388
    %v1439 = vmax.f32 %v1295, %v1406
    %v1440 = vmax.f32 %v1296, %v1389
    %v1441 = vmax.f32 %v1297, %v1407
    %v1442 = vmax.f32 %v1298, %v1390
    %v1443 = vmax.f32 %v1299, %v1408
    %v1444 = vmax.f32 %v1300, %v1391
    %v1445 = vmax.f32 %v1301, %v1409
    %1446 = vrot.lane.b32.xlu0 %v1410, 126
    %v1447 = vpop.permute.xlu0 %1446
    %1448 = vrot.lane.b32.xlu0 %v1412, 126
    %v1449 = vpop.permute.xlu0 %1448
    %1450 = vrot.lane.b32.xlu0 %v1414, 126
    %v1451 = vpop.permute.xlu0 %1450
    %1452 = vrot.lane.b32.xlu0 %v1416, 126
    %v1453 = vpop.permute.xlu0 %1452
    %1454 = vrot.lane.b32.xlu0 %v1418, 126
    %v1455 = vpop.permute.xlu0 %1454
    %1456 = vrot.lane.b32.xlu0 %v1420, 126
    %v1457 = vpop.permute.xlu0 %1456
    %1458 = vrot.lane.b32.xlu0 %v1422, 126
    %v1459 = vpop.permute.xlu0 %1458
    %1460 = vrot.lane.b32.xlu0 %v1424, 126
    %v1461 = vpop.permute.xlu0 %1460
    %1462 = vrot.lane.b32.xlu0 %v1426, 126
    %v1463 = vpop.permute.xlu0 %1462
    %1464 = vrot.lane.b32.xlu0 %v1428, 126
    %v1465 = vpop.permute.xlu0 %1464
    %1466 = vrot.lane.b32.xlu0 %v1430, 126
    %v1467 = vpop.permute.xlu0 %1466
    %1468 = vrot.lane.b32.xlu0 %v1432, 126
    %v1469 = vpop.permute.xlu0 %1468
    %1470 = vrot.lane.b32.xlu0 %v1434, 126
    %v1471 = vpop.permute.xlu0 %1470
    %1472 = vrot.lane.b32.xlu0 %v1436, 126
    %v1473 = vpop.permute.xlu0 %1472
    %1474 = vrot.lane.b32.xlu0 %v1438, 126
    %v1475 = vpop.permute.xlu0 %1474
    %1476 = vrot.lane.b32.xlu0 %v1440, 126
    %v1477 = vpop.permute.xlu0 %1476
    %1478 = vrot.lane.b32.xlu0 %v1442, 126
    %v1479 = vpop.permute.xlu0 %1478
    %1480 = vrot.lane.b32.xlu0 %v1444, 126
    %v1481 = vpop.permute.xlu0 %1480
    %1482 = vrot.lane.b32.xlu0 %v1411, 126
    %v1483 = vpop.permute.xlu0 %1482
    %1484 = vrot.lane.b32.xlu0 %v1413, 126
    %v1485 = vpop.permute.xlu0 %1484
    %1486 = vrot.lane.b32.xlu0 %v1415, 126
    %v1487 = vpop.permute.xlu0 %1486
    %1488 = vrot.lane.b32.xlu0 %v1417, 126
    %v1489 = vpop.permute.xlu0 %1488
    %1490 = vrot.lane.b32.xlu0 %v1419, 126
    %v1491 = vpop.permute.xlu0 %1490
    %1492 = vrot.lane.b32.xlu0 %v1421, 126
    %v1493 = vpop.permute.xlu0 %1492
    %1494 = vrot.lane.b32.xlu0 %v1423, 126
    %v1495 = vpop.permute.xlu0 %1494
    %1496 = vrot.lane.b32.xlu0 %v1425, 126
    %v1497 = vpop.permute.xlu0 %1496
    %1498 = vrot.lane.b32.xlu0 %v1427, 126
    %v1499 = vpop.permute.xlu0 %1498
    %1500 = vrot.lane.b32.xlu0 %v1429, 126
    %v1501 = vpop.permute.xlu0 %1500
    %1502 = vrot.lane.b32.xlu0 %v1431, 126
    %v1503 = vpop.permute.xlu0 %1502
    %1504 = vrot.lane.b32.xlu0 %v1433, 126
    %v1505 = vpop.permute.xlu0 %1504
    %1506 = vrot.lane.b32.xlu0 %v1435, 126
    %v1507 = vpop.permute.xlu0 %1506
    %1508 = vrot.lane.b32.xlu0 %v1437, 126
    %v1509 = vpop.permute.xlu0 %1508
    %1510 = vrot.lane.b32.xlu0 %v1439, 126
    %v1511 = vpop.permute.xlu0 %1510
    %1512 = vrot.lane.b32.xlu0 %v1441, 126
    %v1513 = vpop.permute.xlu0 %1512
    %1514 = vrot.lane.b32.xlu0 %v1443, 126
    %v1515 = vpop.permute.xlu0 %1514
    %1516 = vrot.lane.b32.xlu0 %v1445, 126
    %v1517 = vpop.permute.xlu0 %1516
    %v1518 = vsel %vm501, %v1447, %v1483
    %v1519 = vsel %vm501, %v1449, %v1485
    %v1520 = vsel %vm501, %v1451, %v1487
    %v1521 = vsel %vm501, %v1453, %v1489
    %v1522 = vsel %vm501, %v1455, %v1491
    %v1523 = vsel %vm501, %v1457, %v1493
    %v1524 = vsel %vm501, %v1459, %v1495
    %v1525 = vsel %vm501, %v1461, %v1497
    %v1526 = vsel %vm501, %v1463, %v1499
    %v1527 = vsel %vm501, %v1465, %v1501
    %v1528 = vsel %vm501, %v1467, %v1503
    %v1529 = vsel %vm501, %v1469, %v1505
    %v1530 = vsel %vm501, %v1471, %v1507
    %v1531 = vsel %vm501, %v1473, %v1509
    %v1532 = vsel %vm501, %v1475, %v1511
    %v1533 = vsel %vm501, %v1477, %v1513
    %v1534 = vsel %vm501, %v1479, %v1515
    %v1535 = vsel %vm501, %v1481, %v1517
    %v1536 = vsel %vm501, %v1483, %v1447
    %v1537 = vsel %vm501, %v1485, %v1449
    %v1538 = vsel %vm501, %v1487, %v1451
    %v1539 = vsel %vm501, %v1489, %v1453
    %v1540 = vsel %vm501, %v1491, %v1455
    %v1541 = vsel %vm501, %v1493, %v1457
    %v1542 = vsel %vm501, %v1495, %v1459
    %v1543 = vsel %vm501, %v1497, %v1461
    %v1544 = vsel %vm501, %v1499, %v1463
    %v1545 = vsel %vm501, %v1501, %v1465
    %v1546 = vsel %vm501, %v1503, %v1467
    %v1547 = vsel %vm501, %v1505, %v1469
    %v1548 = vsel %vm501, %v1507, %v1471
    %v1549 = vsel %vm501, %v1509, %v1473
    %v1550 = vsel %vm501, %v1511, %v1475
    %v1551 = vsel %vm501, %v1513, %v1477
    %v1552 = vsel %vm501, %v1515, %v1479
    %v1553 = vsel %vm501, %v1517, %v1481
    %v1554 = vmax.f32 %v1410, %v1518
    %v1555 = vmax.f32 %v1411, %v1536
    %v1556 = vmax.f32 %v1412, %v1519
    %v1557 = vmax.f32 %v1413, %v1537
    %v1558 = vmax.f32 %v1414, %v1520
    %v1559 = vmax.f32 %v1415, %v1538
    %v1560 = vmax.f32 %v1416, %v1521
    %v1561 = vmax.f32 %v1417, %v1539
    %v1562 = vmax.f32 %v1418, %v1522
    %v1563 = vmax.f32 %v1419, %v1540
    %v1564 = vmax.f32 %v1420, %v1523
    %v1565 = vmax.f32 %v1421, %v1541
    %v1566 = vmax.f32 %v1422, %v1524
    %v1567 = vmax.f32 %v1423, %v1542
    %v1568 = vmax.f32 %v1424, %v1525
    %v1569 = vmax.f32 %v1425, %v1543
    %v1570 = vmax.f32 %v1426, %v1526
    %v1571 = vmax.f32 %v1427, %v1544
    %v1572 = vmax.f32 %v1428, %v1527
    %v1573 = vmax.f32 %v1429, %v1545
    %v1574 = vmax.f32 %v1430, %v1528
    %v1575 = vmax.f32 %v1431, %v1546
    %v1576 = vmax.f32 %v1432, %v1529
    %v1577 = vmax.f32 %v1433, %v1547
    %v1578 = vmax.f32 %v1434, %v1530
    %v1579 = vmax.f32 %v1435, %v1548
    %v1580 = vmax.f32 %v1436, %v1531
    %v1581 = vmax.f32 %v1437, %v1549
    %v1582 = vmax.f32 %v1438, %v1532
    %v1583 = vmax.f32 %v1439, %v1550
    %v1584 = vmax.f32 %v1440, %v1533
    %v1585 = vmax.f32 %v1441, %v1551
    %v1586 = vmax.f32 %v1442, %v1534
    %v1587 = vmax.f32 %v1443, %v1552
    %v1588 = vmax.f32 %v1444, %v1535
    %v1589 = vmax.f32 %v1445, %v1553
    %1590 = vrot.lane.b32.xlu0 %v1554, 124
    %v1591 = vpop.permute.xlu0 %1590
    %1592 = vrot.lane.b32.xlu0 %v1556, 124
    %v1593 = vpop.permute.xlu0 %1592
    %1594 = vrot.lane.b32.xlu0 %v1558, 124
    %v1595 = vpop.permute.xlu0 %1594
    %1596 = vrot.lane.b32.xlu0 %v1560, 124
    %v1597 = vpop.permute.xlu0 %1596
    %1598 = vrot.lane.b32.xlu0 %v1562, 124
    %v1599 = vpop.permute.xlu0 %1598
    %1600 = vrot.lane.b32.xlu0 %v1564, 124
    %v1601 = vpop.permute.xlu0 %1600
    %1602 = vrot.lane.b32.xlu0 %v1566, 124
    %v1603 = vpop.permute.xlu0 %1602
    %1604 = vrot.lane.b32.xlu0 %v1568, 124
    %v1605 = vpop.permute.xlu0 %1604
    %1606 = vrot.lane.b32.xlu0 %v1570, 124
    %v1607 = vpop.permute.xlu0 %1606
    %1608 = vrot.lane.b32.xlu0 %v1572, 124
    %v1609 = vpop.permute.xlu0 %1608
    %1610 = vrot.lane.b32.xlu0 %v1574, 124
    %v1611 = vpop.permute.xlu0 %1610
    %1612 = vrot.lane.b32.xlu0 %v1576, 124
    %v1613 = vpop.permute.xlu0 %1612
    %1614 = vrot.lane.b32.xlu0 %v1578, 124
    %v1615 = vpop.permute.xlu0 %1614
    %1616 = vrot.lane.b32.xlu0 %v1580, 124
    %v1617 = vpop.permute.xlu0 %1616
    %1618 = vrot.lane.b32.xlu0 %v1582, 124
    %v1619 = vpop.permute.xlu0 %1618
    %1620 = vrot.lane.b32.xlu0 %v1584, 124
    %v1621 = vpop.permute.xlu0 %1620
    %1622 = vrot.lane.b32.xlu0 %v1586, 124
    %v1623 = vpop.permute.xlu0 %1622
    %1624 = vrot.lane.b32.xlu0 %v1588, 124
    %v1625 = vpop.permute.xlu0 %1624
    %1626 = vrot.lane.b32.xlu0 %v1555, 124
    %v1627 = vpop.permute.xlu0 %1626
    %1628 = vrot.lane.b32.xlu0 %v1557, 124
    %v1629 = vpop.permute.xlu0 %1628
    %1630 = vrot.lane.b32.xlu0 %v1559, 124
    %v1631 = vpop.permute.xlu0 %1630
    %1632 = vrot.lane.b32.xlu0 %v1561, 124
    %v1633 = vpop.permute.xlu0 %1632
    %1634 = vrot.lane.b32.xlu0 %v1563, 124
    %v1635 = vpop.permute.xlu0 %1634
    %1636 = vrot.lane.b32.xlu0 %v1565, 124
    %v1637 = vpop.permute.xlu0 %1636
    %1638 = vrot.lane.b32.xlu0 %v1567, 124
    %v1639 = vpop.permute.xlu0 %1638
    %1640 = vrot.lane.b32.xlu0 %v1569, 124
    %v1641 = vpop.permute.xlu0 %1640
    %1642 = vrot.lane.b32.xlu0 %v1571, 124
    %v1643 = vpop.permute.xlu0 %1642
    %1644 = vrot.lane.b32.xlu0 %v1573, 124
    %v1645 = vpop.permute.xlu0 %1644
    %1646 = vrot.lane.b32.xlu0 %v1575, 124
    %v1647 = vpop.permute.xlu0 %1646
    %1648 = vrot.lane.b32.xlu0 %v1577, 124
    %v1649 = vpop.permute.xlu0 %1648
    %1650 = vrot.lane.b32.xlu0 %v1579, 124
    %v1651 = vpop.permute.xlu0 %1650
    %1652 = vrot.lane.b32.xlu0 %v1581, 124
    %v1653 = vpop.permute.xlu0 %1652
    %1654 = vrot.lane.b32.xlu0 %v1583, 124
    %v1655 = vpop.permute.xlu0 %1654
    %1656 = vrot.lane.b32.xlu0 %v1585, 124
    %v1657 = vpop.permute.xlu0 %1656
    %1658 = vrot.lane.b32.xlu0 %v1587, 124
    %v1659 = vpop.permute.xlu0 %1658
    %1660 = vrot.lane.b32.xlu0 %v1589, 124
    %v1661 = vpop.permute.xlu0 %1660
    %v1662 = vsel %vm646, %v1591, %v1627
    %v1663 = vsel %vm646, %v1593, %v1629
    %v1664 = vsel %vm646, %v1595, %v1631
    %v1665 = vsel %vm646, %v1597, %v1633
    %v1666 = vsel %vm646, %v1599, %v1635
    %v1667 = vsel %vm646, %v1601, %v1637
    %v1668 = vsel %vm646, %v1603, %v1639
    %v1669 = vsel %vm646, %v1605, %v1641
    %v1670 = vsel %vm646, %v1607, %v1643
    %v1671 = vsel %vm646, %v1609, %v1645
    %v1672 = vsel %vm646, %v1611, %v1647
    %v1673 = vsel %vm646, %v1613, %v1649
    %v1674 = vsel %vm646, %v1615, %v1651
    %v1675 = vsel %vm646, %v1617, %v1653
    %v1676 = vsel %vm646, %v1619, %v1655
    %v1677 = vsel %vm646, %v1621, %v1657
    %v1678 = vsel %vm646, %v1623, %v1659
    %v1679 = vsel %vm646, %v1625, %v1661
    %v1680 = vsel %vm646, %v1627, %v1591
    %v1681 = vsel %vm646, %v1629, %v1593
    %v1682 = vsel %vm646, %v1631, %v1595
    %v1683 = vsel %vm646, %v1633, %v1597
    %v1684 = vsel %vm646, %v1635, %v1599
    %v1685 = vsel %vm646, %v1637, %v1601
    %v1686 = vsel %vm646, %v1639, %v1603
    %v1687 = vsel %vm646, %v1641, %v1605
    %v1688 = vsel %vm646, %v1643, %v1607
    %v1689 = vsel %vm646, %v1645, %v1609
    %v1690 = vsel %vm646, %v1647, %v1611
    %v1691 = vsel %vm646, %v1649, %v1613
    %v1692 = vsel %vm646, %v1651, %v1615
    %v1693 = vsel %vm646, %v1653, %v1617
    %v1694 = vsel %vm646, %v1655, %v1619
    %v1695 = vsel %vm646, %v1657, %v1621
    %v1696 = vsel %vm646, %v1659, %v1623
    %v1697 = vsel %vm646, %v1661, %v1625
    %v1698 = vmax.f32 %v1554, %v1662
    %v1699 = vmax.f32 %v1555, %v1680
    %v1700 = vmax.f32 %v1556, %v1663
    %v1701 = vmax.f32 %v1557, %v1681
    %v1702 = vmax.f32 %v1558, %v1664
    %v1703 = vmax.f32 %v1559, %v1682
    %v1704 = vmax.f32 %v1560, %v1665
    %v1705 = vmax.f32 %v1561, %v1683
    %v1706 = vmax.f32 %v1562, %v1666
    %v1707 = vmax.f32 %v1563, %v1684
    %v1708 = vmax.f32 %v1564, %v1667
    %v1709 = vmax.f32 %v1565, %v1685
    %v1710 = vmax.f32 %v1566, %v1668
    %v1711 = vmax.f32 %v1567, %v1686
    %v1712 = vmax.f32 %v1568, %v1669
    %v1713 = vmax.f32 %v1569, %v1687
    %v1714 = vmax.f32 %v1570, %v1670
    %v1715 = vmax.f32 %v1571, %v1688
    %v1716 = vmax.f32 %v1572, %v1671
    %v1717 = vmax.f32 %v1573, %v1689
    %v1718 = vmax.f32 %v1574, %v1672
    %v1719 = vmax.f32 %v1575, %v1690
    %v1720 = vmax.f32 %v1576, %v1673
    %v1721 = vmax.f32 %v1577, %v1691
    %v1722 = vmax.f32 %v1578, %v1674
    %v1723 = vmax.f32 %v1579, %v1692
    %v1724 = vmax.f32 %v1580, %v1675
    %v1725 = vmax.f32 %v1581, %v1693
    %v1726 = vmax.f32 %v1582, %v1676
    %v1727 = vmax.f32 %v1583, %v1694
    %v1728 = vmax.f32 %v1584, %v1677
    %v1729 = vmax.f32 %v1585, %v1695
    %v1730 = vmax.f32 %v1586, %v1678
    %v1731 = vmax.f32 %v1587, %v1696
    %v1732 = vmax.f32 %v1588, %v1679
    %v1733 = vmax.f32 %v1589, %v1697
    %1734 = vrot.lane.b32.xlu0 %v1698, 123
    %v1735 = vpop.permute.xlu0 %1734
    %1736 = vrot.lane.b32.xlu0 %v1700, 123
    %v1737 = vpop.permute.xlu0 %1736
    %1738 = vrot.lane.b32.xlu0 %v1702, 123
    %v1739 = vpop.permute.xlu0 %1738
    %1740 = vrot.lane.b32.xlu0 %v1704, 123
    %v1741 = vpop.permute.xlu0 %1740
    %1742 = vrot.lane.b32.xlu0 %v1706, 123
    %v1743 = vpop.permute.xlu0 %1742
    %1744 = vrot.lane.b32.xlu0 %v1708, 123
    %v1745 = vpop.permute.xlu0 %1744
    %1746 = vrot.lane.b32.xlu0 %v1710, 123
    %v1747 = vpop.permute.xlu0 %1746
    %1748 = vrot.lane.b32.xlu0 %v1712, 123
    %v1749 = vpop.permute.xlu0 %1748
    %1750 = vrot.lane.b32.xlu0 %v1714, 123
    %v1751 = vpop.permute.xlu0 %1750
    %1752 = vrot.lane.b32.xlu0 %v1716, 123
    %v1753 = vpop.permute.xlu0 %1752
    %1754 = vrot.lane.b32.xlu0 %v1718, 123
    %v1755 = vpop.permute.xlu0 %1754
    %1756 = vrot.lane.b32.xlu0 %v1720, 123
    %v1757 = vpop.permute.xlu0 %1756
    %1758 = vrot.lane.b32.xlu0 %v1722, 123
    %v1759 = vpop.permute.xlu0 %1758
    %1760 = vrot.lane.b32.xlu0 %v1724, 123
    %v1761 = vpop.permute.xlu0 %1760
    %1762 = vrot.lane.b32.xlu0 %v1726, 123
    %v1763 = vpop.permute.xlu0 %1762
    %1764 = vrot.lane.b32.xlu0 %v1728, 123
    %v1765 = vpop.permute.xlu0 %1764
    %1766 = vrot.lane.b32.xlu0 %v1730, 123
    %v1767 = vpop.permute.xlu0 %1766
    %1768 = vrot.lane.b32.xlu0 %v1732, 123
    %v1769 = vpop.permute.xlu0 %1768
    %1770 = vrot.lane.b32.xlu0 %v1699, 123
    %v1771 = vpop.permute.xlu0 %1770
    %1772 = vrot.lane.b32.xlu0 %v1701, 123
    %v1773 = vpop.permute.xlu0 %1772
    %1774 = vrot.lane.b32.xlu0 %v1703, 123
    %v1775 = vpop.permute.xlu0 %1774
    %1776 = vrot.lane.b32.xlu0 %v1705, 123
    %v1777 = vpop.permute.xlu0 %1776
    %1778 = vrot.lane.b32.xlu0 %v1707, 123
    %v1779 = vpop.permute.xlu0 %1778
    %1780 = vrot.lane.b32.xlu0 %v1709, 123
    %v1781 = vpop.permute.xlu0 %1780
    %1782 = vrot.lane.b32.xlu0 %v1711, 123
    %v1783 = vpop.permute.xlu0 %1782
    %1784 = vrot.lane.b32.xlu0 %v1713, 123
    %v1785 = vpop.permute.xlu0 %1784
    %1786 = vrot.lane.b32.xlu0 %v1715, 123
    %v1787 = vpop.permute.xlu0 %1786
    %1788 = vrot.lane.b32.xlu0 %v1717, 123
    %v1789 = vpop.permute.xlu0 %1788
    %1790 = vrot.lane.b32.xlu0 %v1719, 123
    %v1791 = vpop.permute.xlu0 %1790
    %1792 = vrot.lane.b32.xlu0 %v1721, 123
    %v1793 = vpop.permute.xlu0 %1792
    %1794 = vrot.lane.b32.xlu0 %v1723, 123
    %v1795 = vpop.permute.xlu0 %1794
    %1796 = vrot.lane.b32.xlu0 %v1725, 123
    %v1797 = vpop.permute.xlu0 %1796
    %1798 = vrot.lane.b32.xlu0 %v1727, 123
    %v1799 = vpop.permute.xlu0 %1798
    %1800 = vrot.lane.b32.xlu0 %v1729, 123
    %v1801 = vpop.permute.xlu0 %1800
    %1802 = vrot.lane.b32.xlu0 %v1731, 123
    %v1803 = vpop.permute.xlu0 %1802
    %1804 = vrot.lane.b32.xlu0 %v1733, 123
    %v1805 = vpop.permute.xlu0 %1804
    %v1806 = vsel %vm791, %v1735, %v1771
    %v1807 = vsel %vm791, %v1737, %v1773
    %v1808 = vsel %vm791, %v1739, %v1775
    %v1809 = vsel %vm791, %v1741, %v1777
    %v1810 = vsel %vm791, %v1743, %v1779
    %v1811 = vsel %vm791, %v1745, %v1781
    %v1812 = vsel %vm791, %v1747, %v1783
    %v1813 = vsel %vm791, %v1749, %v1785
    %v1814 = vsel %vm791, %v1751, %v1787
    %v1815 = vsel %vm791, %v1753, %v1789
    %v1816 = vsel %vm791, %v1755, %v1791
    %v1817 = vsel %vm791, %v1757, %v1793
    %v1818 = vsel %vm791, %v1759, %v1795
    %v1819 = vsel %vm791, %v1761, %v1797
    %v1820 = vsel %vm791, %v1763, %v1799
    %v1821 = vsel %vm791, %v1765, %v1801
    %v1822 = vsel %vm791, %v1767, %v1803
    %v1823 = vsel %vm791, %v1769, %v1805
    %v1824 = vsel %vm791, %v1771, %v1735
    %v1825 = vsel %vm791, %v1773, %v1737
    %v1826 = vsel %vm791, %v1775, %v1739
    %v1827 = vsel %vm791, %v1777, %v1741
    %v1828 = vsel %vm791, %v1779, %v1743
    %v1829 = vsel %vm791, %v1781, %v1745
    %v1830 = vsel %vm791, %v1783, %v1747
    %v1831 = vsel %vm791, %v1785, %v1749
    %v1832 = vsel %vm791, %v1787, %v1751
    %v1833 = vsel %vm791, %v1789, %v1753
    %v1834 = vsel %vm791, %v1791, %v1755
    %v1835 = vsel %vm791, %v1793, %v1757
    %v1836 = vsel %vm791, %v1795, %v1759
    %v1837 = vsel %vm791, %v1797, %v1761
    %v1838 = vsel %vm791, %v1799, %v1763
    %v1839 = vsel %vm791, %v1801, %v1765
    %v1840 = vsel %vm791, %v1803, %v1767
    %v1841 = vsel %vm791, %v1805, %v1769
    %v1842 = vmax.f32 %v1698, %v1806
    %v1843 = vmax.f32 %v1699, %v1824
    %v1844 = vmax.f32 %v1700, %v1807
    %v1845 = vmax.f32 %v1701, %v1825
    %v1846 = vmax.f32 %v1702, %v1808
    %v1847 = vmax.f32 %v1703, %v1826
    %v1848 = vmax.f32 %v1704, %v1809
    %v1849 = vmax.f32 %v1705, %v1827
    %v1850 = vmax.f32 %v1706, %v1810
    %v1851 = vmax.f32 %v1707, %v1828
    %v1852 = vmax.f32 %v1708, %v1811
    %v1853 = vmax.f32 %v1709, %v1829
    %v1854 = vmax.f32 %v1710, %v1812
    %v1855 = vmax.f32 %v1711, %v1830
    %v1856 = vmax.f32 %v1712, %v1813
    %v1857 = vmax.f32 %v1713, %v1831
    %v1858 = vmax.f32 %v1714, %v1814
    %v1859 = vmax.f32 %v1715, %v1832
    %v1860 = vmax.f32 %v1716, %v1815
    %v1861 = vmax.f32 %v1717, %v1833
    %v1862 = vmax.f32 %v1718, %v1816
    %v1863 = vmax.f32 %v1719, %v1834
    %v1864 = vmax.f32 %v1720, %v1817
    %v1865 = vmax.f32 %v1721, %v1835
    %v1866 = vmax.f32 %v1722, %v1818
    %v1867 = vmax.f32 %v1723, %v1836
    %v1868 = vmax.f32 %v1724, %v1819
    %v1869 = vmax.f32 %v1725, %v1837
    %v1870 = vmax.f32 %v1726, %v1820
    %v1871 = vmax.f32 %v1727, %v1838
    %v1872 = vmax.f32 %v1728, %v1821
    %v1873 = vmax.f32 %v1729, %v1839
    %v1874 = vmax.f32 %v1730, %v1822
    %v1875 = vmax.f32 %v1731, %v1840
    %v1876 = vmax.f32 %v1732, %v1823
    %v1877 = vmax.f32 %v1733, %v1841
    %v1878 = vrot.slane %v1842, 1
    %v1879 = vrot.slane %v1843, 1
    %v1880 = vrot.slane %v1844, 1
    %v1881 = vrot.slane %v1845, 1
    %v1882 = vrot.slane %v1846, 1
    %v1883 = vrot.slane %v1847, 1
    %v1884 = vrot.slane %v1848, 1
    %v1885 = vrot.slane %v1849, 1
    %v1886 = vrot.slane %v1850, 1
    %v1887 = vrot.slane %v1851, 1
    %v1888 = vrot.slane %v1852, 1
    %v1889 = vrot.slane %v1853, 1
    %v1890 = vrot.slane %v1854, 1
    %v1891 = vrot.slane %v1855, 1
    %v1892 = vrot.slane %v1856, 1
    %v1893 = vrot.slane %v1857, 1
    %v1894 = vrot.slane %v1858, 1
    %v1895 = vrot.slane %v1859, 1
    %v1896 = vrot.slane %v1860, 1
    %v1897 = vrot.slane %v1861, 1
    %v1898 = vrot.slane %v1862, 1
    %v1899 = vrot.slane %v1863, 1
    %v1900 = vrot.slane %v1864, 1
    %v1901 = vrot.slane %v1865, 1
    %v1902 = vrot.slane %v1866, 1
    %v1903 = vrot.slane %v1867, 1
    %v1904 = vrot.slane %v1868, 1
    %v1905 = vrot.slane %v1869, 1
    %v1906 = vrot.slane %v1870, 1
    %v1907 = vrot.slane %v1871, 1
    %v1908 = vrot.slane %v1872, 1
    %v1909 = vrot.slane %v1873, 1
    %v1910 = vrot.slane %v1874, 1
    %v1911 = vrot.slane %v1875, 1
    %v1912 = vrot.slane %v1876, 1
    %v1913 = vrot.slane %v1877, 1
    %v1914 = vsel %vm902, %v1910, %v1912
    %v1915 = vsel %vm902, %v1911, %v1913
    %v1916 = vsel %vm902, %v1908, %v1910
    %v1917 = vsel %vm902, %v1909, %v1911
    %v1918 = vsel %vm902, %v1906, %v1908
    %v1919 = vsel %vm902, %v1907, %v1909
    %v1920 = vsel %vm902, %v1904, %v1906
    %v1921 = vsel %vm902, %v1905, %v1907
    %v1922 = vsel %vm902, %v1902, %v1904
    %v1923 = vsel %vm902, %v1903, %v1905
    %v1924 = vsel %vm902, %v1900, %v1902
    %v1925 = vsel %vm902, %v1901, %v1903
    %v1926 = vsel %vm902, %v1898, %v1900
    %v1927 = vsel %vm902, %v1899, %v1901
    %v1928 = vsel %vm902, %v1896, %v1898
    %v1929 = vsel %vm902, %v1897, %v1899
    %v1930 = vsel %vm902, %v1894, %v1896
    %v1931 = vsel %vm902, %v1895, %v1897
    %v1932 = vsel %vm902, %v1892, %v1894
    %v1933 = vsel %vm902, %v1893, %v1895
    %v1934 = vsel %vm902, %v1890, %v1892
    %v1935 = vsel %vm902, %v1891, %v1893
    %v1936 = vsel %vm902, %v1888, %v1890
    %v1937 = vsel %vm902, %v1889, %v1891
    %v1938 = vsel %vm902, %v1886, %v1888
    %v1939 = vsel %vm902, %v1887, %v1889
    %v1940 = vsel %vm902, %v1884, %v1886
    %v1941 = vsel %vm902, %v1885, %v1887
    %v1942 = vsel %vm902, %v1882, %v1884
    %v1943 = vsel %vm902, %v1883, %v1885
    %v1944 = vsel %vm902, %v1880, %v1882
    %v1945 = vsel %vm902, %v1881, %v1883
    %v1946 = vsel %vm902, %v1878, %v1880
    %v1947 = vsel %vm902, %v1879, %v1881
    %v1948 = vsel %vm902, %v1912, %v1878
    %v1949 = vsel %vm902, %v1913, %v1879
    %v1950 = vmax.f32 %v1842, %v1946
    %v1951 = vmax.f32 %v1843, %v1947
    %v1952 = vmax.f32 %v1844, %v1944
    %v1953 = vmax.f32 %v1845, %v1945
    %v1954 = vmax.f32 %v1846, %v1942
    %v1955 = vmax.f32 %v1847, %v1943
    %v1956 = vmax.f32 %v1848, %v1940
    %v1957 = vmax.f32 %v1849, %v1941
    %v1958 = vmax.f32 %v1850, %v1938
    %v1959 = vmax.f32 %v1851, %v1939
    %v1960 = vmax.f32 %v1852, %v1936
    %v1961 = vmax.f32 %v1853, %v1937
    %v1962 = vmax.f32 %v1854, %v1934
    %v1963 = vmax.f32 %v1855, %v1935
    %v1964 = vmax.f32 %v1856, %v1932
    %v1965 = vmax.f32 %v1857, %v1933
    %v1966 = vmax.f32 %v1858, %v1930
    %v1967 = vmax.f32 %v1859, %v1931
    %v1968 = vmax.f32 %v1860, %v1928
    %v1969 = vmax.f32 %v1861, %v1929
    %v1970 = vmax.f32 %v1862, %v1926
    %v1971 = vmax.f32 %v1863, %v1927
    %v1972 = vmax.f32 %v1864, %v1924
    %v1973 = vmax.f32 %v1865, %v1925
    %v1974 = vmax.f32 %v1866, %v1922
    %v1975 = vmax.f32 %v1867, %v1923
    %v1976 = vmax.f32 %v1868, %v1920
    %v1977 = vmax.f32 %v1869, %v1921
    %v1978 = vmax.f32 %v1870, %v1918
    %v1979 = vmax.f32 %v1871, %v1919
    %v1980 = vmax.f32 %v1872, %v1916
    %v1981 = vmax.f32 %v1873, %v1917
    %v1982 = vmax.f32 %v1874, %v1914
    %v1983 = vmax.f32 %v1875, %v1915
    %v1984 = vmax.f32 %v1876, %v1948
    %v1985 = vmax.f32 %v1877, %v1949
    %v1986 = vrot.slane %v1950, 2
    %v1987 = vrot.slane %v1951, 2
    %v1988 = vrot.slane %v1952, 2
    %v1989 = vrot.slane %v1953, 2
    %v1990 = vrot.slane %v1954, 2
    %v1991 = vrot.slane %v1955, 2
    %v1992 = vrot.slane %v1956, 2
    %v1993 = vrot.slane %v1957, 2
    %v1994 = vrot.slane %v1958, 2
    %v1995 = vrot.slane %v1959, 2
    %v1996 = vrot.slane %v1960, 2
    %v1997 = vrot.slane %v1961, 2
    %v1998 = vrot.slane %v1962, 2
    %v1999 = vrot.slane %v1963, 2
    %v2000 = vrot.slane %v1964, 2
    %v2001 = vrot.slane %v1965, 2
    %v2002 = vrot.slane %v1966, 2
    %v2003 = vrot.slane %v1967, 2
    %v2004 = vrot.slane %v1968, 2
    %v2005 = vrot.slane %v1969, 2
    %v2006 = vrot.slane %v1970, 2
    %v2007 = vrot.slane %v1971, 2
    %v2008 = vrot.slane %v1972, 2
    %v2009 = vrot.slane %v1973, 2
    %v2010 = vrot.slane %v1974, 2
    %v2011 = vrot.slane %v1975, 2
    %v2012 = vrot.slane %v1976, 2
    %v2013 = vrot.slane %v1977, 2
    %v2014 = vrot.slane %v1978, 2
    %v2015 = vrot.slane %v1979, 2
    %v2016 = vrot.slane %v1980, 2
    %v2017 = vrot.slane %v1981, 2
    %v2018 = vrot.slane %v1982, 2
    %v2019 = vrot.slane %v1983, 2
    %v2020 = vrot.slane %v1984, 2
    %v2021 = vrot.slane %v1985, 2
    %v2022 = vsel %vm1011, %v2018, %v2020
    %v2023 = vsel %vm1011, %v2019, %v2021
    %v2024 = vsel %vm1011, %v2016, %v2018
    %v2025 = vsel %vm1011, %v2017, %v2019
    %v2026 = vsel %vm1011, %v2014, %v2016
    %v2027 = vsel %vm1011, %v2015, %v2017
    %v2028 = vsel %vm1011, %v2012, %v2014
    %v2029 = vsel %vm1011, %v2013, %v2015
    %v2030 = vsel %vm1011, %v2010, %v2012
    %v2031 = vsel %vm1011, %v2011, %v2013
    %v2032 = vsel %vm1011, %v2008, %v2010
    %v2033 = vsel %vm1011, %v2009, %v2011
    %v2034 = vsel %vm1011, %v2006, %v2008
    %v2035 = vsel %vm1011, %v2007, %v2009
    %v2036 = vsel %vm1011, %v2004, %v2006
    %v2037 = vsel %vm1011, %v2005, %v2007
    %v2038 = vsel %vm1011, %v2002, %v2004
    %v2039 = vsel %vm1011, %v2003, %v2005
    %v2040 = vsel %vm1011, %v2000, %v2002
    %v2041 = vsel %vm1011, %v2001, %v2003
    %v2042 = vsel %vm1011, %v1998, %v2000
    %v2043 = vsel %vm1011, %v1999, %v2001
    %v2044 = vsel %vm1011, %v1996, %v1998
    %v2045 = vsel %vm1011, %v1997, %v1999
    %v2046 = vsel %vm1011, %v1994, %v1996
    %v2047 = vsel %vm1011, %v1995, %v1997
    %v2048 = vsel %vm1011, %v1992, %v1994
    %v2049 = vsel %vm1011, %v1993, %v1995
    %v2050 = vsel %vm1011, %v1990, %v1992
    %v2051 = vsel %vm1011, %v1991, %v1993
    %v2052 = vsel %vm1011, %v1988, %v1990
    %v2053 = vsel %vm1011, %v1989, %v1991
    %v2054 = vsel %vm1011, %v1986, %v1988
    %v2055 = vsel %vm1011, %v1987, %v1989
    %v2056 = vsel %vm1011, %v2020, %v1986
    %v2057 = vsel %vm1011, %v2021, %v1987
    %v2058 = vmax.f32 %v1950, %v2054
    %v2059 = vmax.f32 %v1951, %v2055
    %v2060 = vmax.f32 %v1952, %v2052
    %v2061 = vmax.f32 %v1953, %v2053
    %v2062 = vmax.f32 %v1954, %v2050
    %v2063 = vmax.f32 %v1955, %v2051
    %v2064 = vmax.f32 %v1956, %v2048
    %v2065 = vmax.f32 %v1957, %v2049
    %v2066 = vmax.f32 %v1958, %v2046
    %v2067 = vmax.f32 %v1959, %v2047
    %v2068 = vmax.f32 %v1960, %v2044
    %v2069 = vmax.f32 %v1961, %v2045
    %v2070 = vmax.f32 %v1962, %v2042
    %v2071 = vmax.f32 %v1963, %v2043
    %v2072 = vmax.f32 %v1964, %v2040
    %v2073 = vmax.f32 %v1965, %v2041
    %v2074 = vmax.f32 %v1966, %v2038
    %v2075 = vmax.f32 %v1967, %v2039
    %v2076 = vmax.f32 %v1968, %v2036
    %v2077 = vmax.f32 %v1969, %v2037
    %v2078 = vmax.f32 %v1970, %v2034
    %v2079 = vmax.f32 %v1971, %v2035
    %v2080 = vmax.f32 %v1972, %v2032
    %v2081 = vmax.f32 %v1973, %v2033
    %v2082 = vmax.f32 %v1974, %v2030
    %v2083 = vmax.f32 %v1975, %v2031
    %v2084 = vmax.f32 %v1976, %v2028
    %v2085 = vmax.f32 %v1977, %v2029
    %v2086 = vmax.f32 %v1978, %v2026
    %v2087 = vmax.f32 %v1979, %v2027
    %v2088 = vmax.f32 %v1980, %v2024
    %v2089 = vmax.f32 %v1981, %v2025
    %v2090 = vmax.f32 %v1982, %v2022
    %v2091 = vmax.f32 %v1983, %v2023
    %v2092 = vmax.f32 %v1984, %v2056
    %v2093 = vmax.f32 %v1985, %v2057
    %v2094 = vrot.slane %v2058, 4
    %v2095 = vrot.slane %v2059, 4
    %v2096 = vrot.slane %v2060, 4
    %v2097 = vrot.slane %v2061, 4
    %v2098 = vrot.slane %v2062, 4
    %v2099 = vrot.slane %v2063, 4
    %v2100 = vrot.slane %v2064, 4
    %v2101 = vrot.slane %v2065, 4
    %v2102 = vrot.slane %v2066, 4
    %v2103 = vrot.slane %v2067, 4
    %v2104 = vrot.slane %v2068, 4
    %v2105 = vrot.slane %v2069, 4
    %v2106 = vrot.slane %v2070, 4
    %v2107 = vrot.slane %v2071, 4
    %v2108 = vrot.slane %v2072, 4
    %v2109 = vrot.slane %v2073, 4
    %v2110 = vrot.slane %v2074, 4
    %v2111 = vrot.slane %v2075, 4
    %v2112 = vrot.slane %v2076, 4
    %v2113 = vrot.slane %v2077, 4
    %v2114 = vrot.slane %v2078, 4
    %v2115 = vrot.slane %v2079, 4
    %v2116 = vrot.slane %v2080, 4
    %v2117 = vrot.slane %v2081, 4
    %v2118 = vrot.slane %v2082, 4
    %v2119 = vrot.slane %v2083, 4
    %v2120 = vrot.slane %v2084, 4
    %v2121 = vrot.slane %v2085, 4
    %v2122 = vrot.slane %v2086, 4
    %v2123 = vrot.slane %v2087, 4
    %v2124 = vrot.slane %v2088, 4
    %v2125 = vrot.slane %v2089, 4
    %v2126 = vrot.slane %v2090, 4
    %v2127 = vrot.slane %v2091, 4
    %v2128 = vrot.slane %v2092, 4
    %v2129 = vrot.slane %v2093, 4
    %v2130 = vsel %vm1120, %v2126, %v2128
    %v2131 = vsel %vm1120, %v2127, %v2129
    %v2132 = vsel %vm1120, %v2124, %v2126
    %v2133 = vsel %vm1120, %v2125, %v2127
    %v2134 = vsel %vm1120, %v2122, %v2124
    %v2135 = vsel %vm1120, %v2123, %v2125
    %v2136 = vsel %vm1120, %v2120, %v2122
    %v2137 = vsel %vm1120, %v2121, %v2123
    %v2138 = vsel %vm1120, %v2118, %v2120
    %v2139 = vsel %vm1120, %v2119, %v2121
    %v2140 = vsel %vm1120, %v2116, %v2118
    %v2141 = vsel %vm1120, %v2117, %v2119
    %v2142 = vsel %vm1120, %v2114, %v2116
    %v2143 = vsel %vm1120, %v2115, %v2117
    %v2144 = vsel %vm1120, %v2112, %v2114
    %v2145 = vsel %vm1120, %v2113, %v2115
    %v2146 = vsel %vm1120, %v2110, %v2112
    %v2147 = vsel %vm1120, %v2111, %v2113
    %v2148 = vsel %vm1120, %v2108, %v2110
    %v2149 = vsel %vm1120, %v2109, %v2111
    %v2150 = vsel %vm1120, %v2106, %v2108
    %v2151 = vsel %vm1120, %v2107, %v2109
    %v2152 = vsel %vm1120, %v2104, %v2106
    %v2153 = vsel %vm1120, %v2105, %v2107
    %v2154 = vsel %vm1120, %v2102, %v2104
    %v2155 = vsel %vm1120, %v2103, %v2105
    %v2156 = vsel %vm1120, %v2100, %v2102
    %v2157 = vsel %vm1120, %v2101, %v2103
    %v2158 = vsel %vm1120, %v2098, %v2100
    %v2159 = vsel %vm1120, %v2099, %v2101
    %v2160 = vsel %vm1120, %v2096, %v2098
    %v2161 = vsel %vm1120, %v2097, %v2099
    %v2162 = vsel %vm1120, %v2094, %v2096
    %v2163 = vsel %vm1120, %v2095, %v2097
    %v2164 = vsel %vm1120, %v2128, %v2094
    %v2165 = vsel %vm1120, %v2129, %v2095
    %v2166 = vmax.f32 %v2058, %v2162
    %v2167 = vmax.f32 %v2059, %v2163
    %v2168 = vmax.f32 %v2060, %v2160
    %v2169 = vmax.f32 %v2061, %v2161
    %v2170 = vmax.f32 %v2062, %v2158
    %v2171 = vmax.f32 %v2063, %v2159
    %v2172 = vmax.f32 %v2064, %v2156
    %v2173 = vmax.f32 %v2065, %v2157
    %v2174 = vmax.f32 %v2066, %v2154
    %v2175 = vmax.f32 %v2067, %v2155
    %v2176 = vmax.f32 %v2068, %v2152
    %v2177 = vmax.f32 %v2069, %v2153
    %v2178 = vmax.f32 %v2070, %v2150
    %v2179 = vmax.f32 %v2071, %v2151
    %v2180 = vmax.f32 %v2072, %v2148
    %v2181 = vmax.f32 %v2073, %v2149
    %v2182 = vmax.f32 %v2074, %v2146
    %v2183 = vmax.f32 %v2075, %v2147
    %v2184 = vmax.f32 %v2076, %v2144
    %v2185 = vmax.f32 %v2077, %v2145
    %v2186 = vmax.f32 %v2078, %v2142
    %v2187 = vmax.f32 %v2079, %v2143
    %v2188 = vmax.f32 %v2080, %v2140
    %v2189 = vmax.f32 %v2081, %v2141
    %v2190 = vmax.f32 %v2082, %v2138
    %v2191 = vmax.f32 %v2083, %v2139
    %v2192 = vmax.f32 %v2084, %v2136
    %v2193 = vmax.f32 %v2085, %v2137
    %v2194 = vmax.f32 %v2086, %v2134
    %v2195 = vmax.f32 %v2087, %v2135
    %v2196 = vmax.f32 %v2088, %v2132
    %v2197 = vmax.f32 %v2089, %v2133
    %v2198 = vmax.f32 %v2090, %v2130
    %v2199 = vmax.f32 %v2091, %v2131
    %v2200 = vmax.f32 %v2092, %v2164
    %v2201 = vmax.f32 %v2093, %v2165
    %v2202 = vrot.slane %v2166, 5
    %v2203 = vrot.slane %v2167, 5
    %v2204 = vrot.slane %v2168, 5
    %v2205 = vrot.slane %v2169, 5
    %v2206 = vrot.slane %v2170, 5
    %v2207 = vrot.slane %v2171, 5
    %v2208 = vrot.slane %v2172, 5
    %v2209 = vrot.slane %v2173, 5
    %v2210 = vrot.slane %v2174, 5
    %v2211 = vrot.slane %v2175, 5
    %v2212 = vrot.slane %v2176, 5
    %v2213 = vrot.slane %v2177, 5
    %v2214 = vrot.slane %v2178, 5
    %v2215 = vrot.slane %v2179, 5
    %v2216 = vrot.slane %v2180, 5
    %v2217 = vrot.slane %v2181, 5
    %v2218 = vrot.slane %v2182, 5
    %v2219 = vrot.slane %v2183, 5
    %v2220 = vrot.slane %v2184, 5
    %v2221 = vrot.slane %v2185, 5
    %v2222 = vrot.slane %v2186, 5
    %v2223 = vrot.slane %v2187, 5
    %v2224 = vrot.slane %v2188, 5
    %v2225 = vrot.slane %v2189, 5
    %v2226 = vrot.slane %v2190, 5
    %v2227 = vrot.slane %v2191, 5
    %v2228 = vrot.slane %v2192, 5
    %v2229 = vrot.slane %v2193, 5
    %v2230 = vrot.slane %v2194, 5
    %v2231 = vrot.slane %v2195, 5
    %v2232 = vrot.slane %v2196, 5
    %v2233 = vrot.slane %v2197, 5
    %v2234 = vrot.slane %v2198, 5
    %v2235 = vrot.slane %v2199, 5
    %v2236 = vrot.slane %v2200, 5
    %v2237 = vrot.slane %v2201, 5
    %v2238 = vsel %vm1229, %v2234, %v2236
    %v2239 = vsel %vm1229, %v2235, %v2237
    %v2240 = vsel %vm1229, %v2232, %v2234
    %v2241 = vsel %vm1229, %v2233, %v2235
    %v2242 = vsel %vm1229, %v2230, %v2232
    %v2243 = vsel %vm1229, %v2231, %v2233
    %v2244 = vsel %vm1229, %v2228, %v2230
    %v2245 = vsel %vm1229, %v2229, %v2231
    %v2246 = vsel %vm1229, %v2226, %v2228
    %v2247 = vsel %vm1229, %v2227, %v2229
    %v2248 = vsel %vm1229, %v2224, %v2226
    %v2249 = vsel %vm1229, %v2225, %v2227
    %v2250 = vsel %vm1229, %v2222, %v2224
    %v2251 = vsel %vm1229, %v2223, %v2225
    %v2252 = vsel %vm1229, %v2220, %v2222
    %v2253 = vsel %vm1229, %v2221, %v2223
    %v2254 = vsel %vm1229, %v2218, %v2220
    %v2255 = vsel %vm1229, %v2219, %v2221
    %v2256 = vsel %vm1229, %v2216, %v2218
    %v2257 = vsel %vm1229, %v2217, %v2219
    %v2258 = vsel %vm1229, %v2214, %v2216
    %v2259 = vsel %vm1229, %v2215, %v2217
    %v2260 = vsel %vm1229, %v2212, %v2214
    %v2261 = vsel %vm1229, %v2213, %v2215
    %v2262 = vsel %vm1229, %v2210, %v2212
    %v2263 = vsel %vm1229, %v2211, %v2213
    %v2264 = vsel %vm1229, %v2208, %v2210
    %v2265 = vsel %vm1229, %v2209, %v2211
    %v2266 = vsel %vm1229, %v2206, %v2208
    %v2267 = vsel %vm1229, %v2207, %v2209
    %v2268 = vsel %vm1229, %v2204, %v2206
    %v2269 = vsel %vm1229, %v2205, %v2207
    %v2270 = vsel %vm1229, %v2202, %v2204
    %v2271 = vsel %vm1229, %v2203, %v2205
    %v2272 = vsel %vm1229, %v2236, %v2202
    %v2273 = vsel %vm1229, %v2237, %v2203
    %v2274 = vmax.f32 %v2166, %v2270
    %v2275 = vmax.f32 %v2167, %v2271
    %v2276 = vmax.f32 %v2168, %v2268
    %v2277 = vmax.f32 %v2169, %v2269
    %v2278 = vmax.f32 %v2170, %v2266
    %v2279 = vmax.f32 %v2171, %v2267
    %v2280 = vmax.f32 %v2172, %v2264
    %v2281 = vmax.f32 %v2173, %v2265
    %v2282 = vmax.f32 %v2174, %v2262
    %v2283 = vmax.f32 %v2175, %v2263
    %v2284 = vmax.f32 %v2176, %v2260
    %v2285 = vmax.f32 %v2177, %v2261
    %v2286 = vmax.f32 %v2178, %v2258
    %v2287 = vmax.f32 %v2179, %v2259
    %v2288 = vmax.f32 %v2180, %v2256
    %v2289 = vmax.f32 %v2181, %v2257
    %v2290 = vmax.f32 %v2182, %v2254
    %v2291 = vmax.f32 %v2183, %v2255
    %v2292 = vmax.f32 %v2184, %v2252
    %v2293 = vmax.f32 %v2185, %v2253
    %v2294 = vmax.f32 %v2186, %v2250
    %v2295 = vmax.f32 %v2187, %v2251
    %v2296 = vmax.f32 %v2188, %v2248
    %v2297 = vmax.f32 %v2189, %v2249
    %v2298 = vmax.f32 %v2190, %v2246
    %v2299 = vmax.f32 %v2191, %v2247
    %v2300 = vmax.f32 %v2192, %v2244
    %v2301 = vmax.f32 %v2193, %v2245
    %v2302 = vmax.f32 %v2194, %v2242
    %v2303 = vmax.f32 %v2195, %v2243
    %v2304 = vmax.f32 %v2196, %v2240
    %v2305 = vmax.f32 %v2197, %v2241
    %v2306 = vmax.f32 %v2198, %v2238
    %v2307 = vmax.f32 %v2199, %v2239
    %v2308 = vmax.f32 %v2200, %v2272
    %v2309 = vmax.f32 %v2201, %v2273
    %vm2310 = vcmp.gt.f32.partialorder %v2274, 0.0
    %vm2311 = vcmp.gt.f32.partialorder %v2275, 0.0
    %vm2312 = vcmp.gt.f32.partialorder %v2276, 0.0
    %vm2313 = vcmp.gt.f32.partialorder %v2277, 0.0
    %vm2314 = vcmp.gt.f32.partialorder %v2278, 0.0
    %vm2315 = vcmp.gt.f32.partialorder %v2279, 0.0
    %vm2316 = vcmp.gt.f32.partialorder %v2280, 0.0
    %vm2317 = vcmp.gt.f32.partialorder %v2281, 0.0
    %vm2318 = vcmp.gt.f32.partialorder %v2282, 0.0
    %vm2319 = vcmp.gt.f32.partialorder %v2283, 0.0
    %vm2320 = vcmp.gt.f32.partialorder %v2284, 0.0
    %vm2321 = vcmp.gt.f32.partialorder %v2285, 0.0
    %vm2322 = vcmp.gt.f32.partialorder %v2286, 0.0
    %vm2323 = vcmp.gt.f32.partialorder %v2287, 0.0
    %vm2324 = vcmp.gt.f32.partialorder %v2288, 0.0
    %vm2325 = vcmp.gt.f32.partialorder %v2289, 0.0
    %vm2326 = vcmp.gt.f32.partialorder %v2290, 0.0
    %vm2327 = vcmp.gt.f32.partialorder %v2291, 0.0
    %vm2328 = vcmp.gt.f32.partialorder %v2292, 0.0
    %vm2329 = vcmp.gt.f32.partialorder %v2293, 0.0
    %vm2330 = vcmp.gt.f32.partialorder %v2294, 0.0
    %vm2331 = vcmp.gt.f32.partialorder %v2295, 0.0
    %vm2332 = vcmp.gt.f32.partialorder %v2296, 0.0
    %vm2333 = vcmp.gt.f32.partialorder %v2297, 0.0
    %vm2334 = vcmp.gt.f32.partialorder %v2298, 0.0
    %vm2335 = vcmp.gt.f32.partialorder %v2299, 0.0
    %vm2336 = vcmp.gt.f32.partialorder %v2300, 0.0
    %vm2337 = vcmp.gt.f32.partialorder %v2301, 0.0
    %vm2338 = vcmp.gt.f32.partialorder %v2302, 0.0
    %vm2339 = vcmp.gt.f32.partialorder %v2303, 0.0
    %vm2340 = vcmp.gt.f32.partialorder %v2304, 0.0
    %vm2341 = vcmp.gt.f32.partialorder %v2305, 0.0
    %vm2342 = vcmp.gt.f32.partialorder %v2306, 0.0
    %vm2343 = vcmp.gt.f32.partialorder %v2307, 0.0
    %vm2344 = vcmp.gt.f32.partialorder %v2308, 0.0
    %vm2345 = vcmp.gt.f32.partialorder %v2309, 0.0
    %v2346 = vsel %vm2310, 1, 0
    %v2347 = vsel %vm2311, 1, 0
    %v2348 = vsel %vm2312, 1, 0
    %v2349 = vsel %vm2313, 1, 0
    %v2350 = vsel %vm2314, 1, 0
    %v2351 = vsel %vm2315, 1, 0
    %v2352 = vsel %vm2316, 1, 0
    %v2353 = vsel %vm2317, 1, 0
    %v2354 = vsel %vm2318, 1, 0
    %v2355 = vsel %vm2319, 1, 0
    %v2356 = vsel %vm2320, 1, 0
    %v2357 = vsel %vm2321, 1, 0
    %v2358 = vsel %vm2322, 1, 0
    %v2359 = vsel %vm2323, 1, 0
    %v2360 = vsel %vm2324, 1, 0
    %v2361 = vsel %vm2325, 1, 0
    %v2362 = vsel %vm2326, 1, 0
    %v2363 = vsel %vm2327, 1, 0
    %v2364 = vsel %vm2328, 1, 0
    %v2365 = vsel %vm2329, 1, 0
    %v2366 = vsel %vm2330, 1, 0
    %v2367 = vsel %vm2331, 1, 0
    %v2368 = vsel %vm2332, 1, 0
    %v2369 = vsel %vm2333, 1, 0
    %v2370 = vsel %vm2334, 1, 0
    %v2371 = vsel %vm2335, 1, 0
    %v2372 = vsel %vm2336, 1, 0
    %v2373 = vsel %vm2337, 1, 0
    %v2374 = vsel %vm2338, 1, 0
    %v2375 = vsel %vm2339, 1, 0
    %v2376 = vsel %vm2340, 1, 0
    %v2377 = vsel %vm2341, 1, 0
    %v2378 = vsel %vm2342, 1, 0
    %v2379 = vsel %vm2343, 1, 0
    %v2380 = vsel %vm2344, 1, 0
    %v2381 = vsel %vm2345, 1, 0
    %v2382 = vcvt.s32.f32 %v2346
    %v2383 = vcvt.s32.f32 %v2347
    %v2384 = vcvt.s32.f32 %v2348
    %v2385 = vcvt.s32.f32 %v2349
    %v2386 = vcvt.s32.f32 %v2350
    %v2387 = vcvt.s32.f32 %v2351
    %v2388 = vcvt.s32.f32 %v2352
    %v2389 = vcvt.s32.f32 %v2353
    %v2390 = vcvt.s32.f32 %v2354
    %v2391 = vcvt.s32.f32 %v2355
    %v2392 = vcvt.s32.f32 %v2356
    %v2393 = vcvt.s32.f32 %v2357
    %v2394 = vcvt.s32.f32 %v2358
    %v2395 = vcvt.s32.f32 %v2359
    %v2396 = vcvt.s32.f32 %v2360
    %v2397 = vcvt.s32.f32 %v2361
    %v2398 = vcvt.s32.f32 %v2362
    %v2399 = vcvt.s32.f32 %v2363
    %v2400 = vcvt.s32.f32 %v2364
    %v2401 = vcvt.s32.f32 %v2365
    %v2402 = vcvt.s32.f32 %v2366
    %v2403 = vcvt.s32.f32 %v2367
    %v2404 = vcvt.s32.f32 %v2368
    %v2405 = vcvt.s32.f32 %v2369
    %v2406 = vcvt.s32.f32 %v2370
    %v2407 = vcvt.s32.f32 %v2371
    %v2408 = vcvt.s32.f32 %v2372
    %v2409 = vcvt.s32.f32 %v2373
    %v2410 = vcvt.s32.f32 %v2374
    %v2411 = vcvt.s32.f32 %v2375
    %v2412 = vcvt.s32.f32 %v2376
    %v2413 = vcvt.s32.f32 %v2377
    %v2414 = vcvt.s32.f32 %v2378
    %v2415 = vcvt.s32.f32 %v2379
    %v2416 = vcvt.s32.f32 %v2380
    %v2417 = vcvt.s32.f32 %v2381
    %v2418 = vadd.s32 %v901, 8
    %v2419 = vadd.s32 %v901, 16
    %v2420 = vadd.s32 %v901, 24
    %v2421 = vadd.s32 %v901, 32
    %v2422 = vadd.s32 %v901, 40
    %v2423 = vadd.s32 %v901, 48
    %v2424 = vadd.s32 %v901, 56
    %v2425 = vadd.s32 %v901, 64
    %v2426 = vadd.s32 %v901, 72
    %v2427 = vadd.s32 %v901, 80
    %v2428 = vadd.s32 %v901, 88
    %v2429 = vadd.s32 %v901, 96
    %v2430 = vadd.s32 %v901, 104
    %v2431 = vadd.s32 %v901, 112
    %v2432 = vadd.s32 %v901, 120
    %v2433 = vadd.s32 %v901, 128
    %v2434 = vadd.s32 %v901, 136
    %v2435 = vadd.s32 %v901, 144
    %v2436 = vadd.s32 %v901, 152
    %v2437 = vadd.s32 %v901, 160
    %v2438 = vadd.s32 %v901, 168
    %v2439 = vadd.s32 %v901, 176
    %v2440 = vadd.s32 %v901, 184
    %v2441 = vadd.s32 %v901, 192
    %v2442 = vadd.s32 %v901, 200
    %v2443 = vadd.s32 %v901, 208
    %v2444 = vadd.s32 %v901, 216
    %v2445 = vadd.s32 %v901, 224
    %v2446 = vadd.s32 %v901, 232
    %v2447 = vadd.s32 %v901, 240
    %v2448 = vadd.s32 %v901, 248
    %vm2449 = vcmp.ge.s32.totalorder %v901, 0
    %vm2450 = vcmp.ge.s32.totalorder %v2418, 0
    %vm2451 = vcmp.ge.s32.totalorder %v2419, 0
    %vm2452 = vcmp.ge.s32.totalorder %v2420, 0
    %vm2453 = vcmp.ge.s32.totalorder %v2421, 0
    %vm2454 = vcmp.ge.s32.totalorder %v2422, 0
    %vm2455 = vcmp.ge.s32.totalorder %v2423, 0
    %vm2456 = vcmp.ge.s32.totalorder %v2424, 0
    %vm2457 = vcmp.ge.s32.totalorder %v2425, 0
    %vm2458 = vcmp.ge.s32.totalorder %v2426, 0
    %vm2459 = vcmp.ge.s32.totalorder %v2427, 0
    %vm2460 = vcmp.ge.s32.totalorder %v2428, 0
    %vm2461 = vcmp.ge.s32.totalorder %v2429, 0
    %vm2462 = vcmp.ge.s32.totalorder %v2430, 0
    %vm2463 = vcmp.ge.s32.totalorder %v2431, 0
    %vm2464 = vcmp.ge.s32.totalorder %v2432, 0
    %vm2465 = vcmp.ge.s32.totalorder %v2433, 0
    %vm2466 = vcmp.ge.s32.totalorder %v2434, 0
    %vm2467 = vcmp.ge.s32.totalorder %v2435, 0
    %vm2468 = vcmp.ge.s32.totalorder %v2436, 0
    %vm2469 = vcmp.ge.s32.totalorder %v2437, 0
    %vm2470 = vcmp.ge.s32.totalorder %v2438, 0
    %vm2471 = vcmp.ge.s32.totalorder %v2439, 0
    %vm2472 = vcmp.ge.s32.totalorder %v2440, 0
    %vm2473 = vcmp.ge.s32.totalorder %v2441, 0
    %vm2474 = vcmp.ge.s32.totalorder %v2442, 0
    %vm2475 = vcmp.ge.s32.totalorder %v2443, 0
    %vm2476 = vcmp.ge.s32.totalorder %v2444, 0
    %vm2477 = vcmp.ge.s32.totalorder %v2445, 0
    %vm2478 = vcmp.ge.s32.totalorder %v2446, 0
    %vm2479 = vcmp.ge.s32.totalorder %v2447, 0
    %vm2480 = vcmp.ge.s32.totalorder %v2448, 0
    %vm2481 = vcmp.lt.s32.totalorder %v901, 200
    %vm2482 = vcmp.lt.s32.totalorder %v2418, 200
    %vm2483 = vcmp.lt.s32.totalorder %v2419, 200
    %vm2484 = vcmp.lt.s32.totalorder %v2420, 200
    %vm2485 = vcmp.lt.s32.totalorder %v2421, 200
    %vm2486 = vcmp.lt.s32.totalorder %v2422, 200
    %vm2487 = vcmp.lt.s32.totalorder %v2423, 200
    %vm2488 = vcmp.lt.s32.totalorder %v2424, 200
    %vm2489 = vcmp.lt.s32.totalorder %v2425, 200
    %vm2490 = vcmp.lt.s32.totalorder %v2426, 200
    %vm2491 = vcmp.lt.s32.totalorder %v2427, 200
    %vm2492 = vcmp.lt.s32.totalorder %v2428, 200
    %vm2493 = vcmp.lt.s32.totalorder %v2429, 200
    %vm2494 = vcmp.lt.s32.totalorder %v2430, 200
    %vm2495 = vcmp.lt.s32.totalorder %v2431, 200
    %vm2496 = vcmp.lt.s32.totalorder %v2432, 200
    %vm2497 = vcmp.lt.s32.totalorder %v2433, 200
    %vm2498 = vcmp.lt.s32.totalorder %v2434, 200
    %vm2499 = vcmp.lt.s32.totalorder %v2435, 200
    %vm2500 = vcmp.lt.s32.totalorder %v2436, 200
    %vm2501 = vcmp.lt.s32.totalorder %v2437, 200
    %vm2502 = vcmp.lt.s32.totalorder %v2438, 200
    %vm2503 = vcmp.lt.s32.totalorder %v2439, 200
    %vm2504 = vcmp.lt.s32.totalorder %v2440, 200
    %vm2505 = vcmp.lt.s32.totalorder %v2441, 200
    %vm2506 = vcmp.lt.s32.totalorder %v2442, 200
    %vm2507 = vcmp.lt.s32.totalorder %v2443, 200
    %vm2508 = vcmp.lt.s32.totalorder %v2444, 200
    %vm2509 = vcmp.lt.s32.totalorder %v2445, 200
    %vm2510 = vcmp.lt.s32.totalorder %v2446, 200
    %vm2511 = vcmp.lt.s32.totalorder %v2447, 200
    %vm2512 = vcmp.lt.s32.totalorder %v2448, 200
    %vm2513 = vmand %vm2449, %vm2481
    %vm2514 = vmand %vm2450, %vm2482
    %vm2515 = vmand %vm2451, %vm2483
    %vm2516 = vmand %vm2452, %vm2484
    %vm2517 = vmand %vm2453, %vm2485
    %vm2518 = vmand %vm2454, %vm2486
    %vm2519 = vmand %vm2455, %vm2487
    %vm2520 = vmand %vm2456, %vm2488
    %vm2521 = vmand %vm2457, %vm2489
    %vm2522 = vmand %vm2458, %vm2490
    %vm2523 = vmand %vm2459, %vm2491
    %vm2524 = vmand %vm2460, %vm2492
    %vm2525 = vmand %vm2461, %vm2493
    %vm2526 = vmand %vm2462, %vm2494
    %vm2527 = vmand %vm2463, %vm2495
    %vm2528 = vmand %vm2464, %vm2496
    %vm2529 = vmand %vm2465, %vm2497
    %vm2530 = vmand %vm2466, %vm2498
    %vm2531 = vmand %vm2467, %vm2499
    %vm2532 = vmand %vm2468, %vm2500
    %vm2533 = vmand %vm2469, %vm2501
    %vm2534 = vmand %vm2470, %vm2502
    %vm2535 = vmand %vm2471, %vm2503
    %vm2536 = vmand %vm2472, %vm2504
    %vm2537 = vmand %vm2473, %vm2505
    %vm2538 = vmand %vm2474, %vm2506
    %vm2539 = vmand %vm2475, %vm2507
    %vm2540 = vmand %vm2476, %vm2508
    %vm2541 = vmand %vm2477, %vm2509
    %vm2542 = vmand %vm2478, %vm2510
    %vm2543 = vmand %vm2479, %vm2511
    %vm2544 = vmand %vm2480, %vm2512
    %v2545 = vsel %vm2513, 1, 0
    %v2546 = vsel %vm2514, 1, 0
    %v2547 = vsel %vm2515, 1, 0
    %v2548 = vsel %vm2516, 1, 0
    %v2549 = vsel %vm2517, 1, 0
    %v2550 = vsel %vm2518, 1, 0
    %v2551 = vsel %vm2519, 1, 0
    %v2552 = vsel %vm2520, 1, 0
    %v2553 = vsel %vm2521, 1, 0
    %v2554 = vsel %vm2522, 1, 0
    %v2555 = vsel %vm2523, 1, 0
    %v2556 = vsel %vm2524, 1, 0
    %v2557 = vsel %vm2525, 1, 0
    %v2558 = vsel %vm2526, 1, 0
    %v2559 = vsel %vm2527, 1, 0
    %v2560 = vsel %vm2528, 1, 0
    %v2561 = vsel %vm2529, 1, 0
    %v2562 = vsel %vm2530, 1, 0
    %v2563 = vsel %vm2531, 1, 0
    %v2564 = vsel %vm2532, 1, 0
    %v2565 = vsel %vm2533, 1, 0
    %v2566 = vsel %vm2534, 1, 0
    %v2567 = vsel %vm2535, 1, 0
    %v2568 = vsel %vm2536, 1, 0
    %v2569 = vsel %vm2537, 1, 0
    %v2570 = vsel %vm2538, 1, 0
    %v2571 = vsel %vm2539, 1, 0
    %v2572 = vsel %vm2540, 1, 0
    %v2573 = vsel %vm2541, 1, 0
    %v2574 = vsel %vm2542, 1, 0
    %v2575 = vsel %vm2543, 1, 0
    %v2576 = vsel %vm2544, 1, 0
    %v2577 = vcvt.s32.f32 %v2545
    %v2578 = vcvt.s32.f32 %v2546
    %v2579 = vcvt.s32.f32 %v2547
    %v2580 = vcvt.s32.f32 %v2548
    %v2581 = vcvt.s32.f32 %v2549
    %v2582 = vcvt.s32.f32 %v2550
    %v2583 = vcvt.s32.f32 %v2551
    %v2584 = vcvt.s32.f32 %v2552
    %v2585 = vcvt.s32.f32 %v2553
    %v2586 = vcvt.s32.f32 %v2554
    %v2587 = vcvt.s32.f32 %v2555
    %v2588 = vcvt.s32.f32 %v2556
    %v2589 = vcvt.s32.f32 %v2557
    %v2590 = vcvt.s32.f32 %v2558
    %v2591 = vcvt.s32.f32 %v2559
    %v2592 = vcvt.s32.f32 %v2560
    %v2593 = vcvt.s32.f32 %v2561
    %v2594 = vcvt.s32.f32 %v2562
    %v2595 = vcvt.s32.f32 %v2563
    %v2596 = vcvt.s32.f32 %v2564
    %v2597 = vcvt.s32.f32 %v2565
    %v2598 = vcvt.s32.f32 %v2566
    %v2599 = vcvt.s32.f32 %v2567
    %v2600 = vcvt.s32.f32 %v2568
    %v2601 = vcvt.s32.f32 %v2569
    %v2602 = vcvt.s32.f32 %v2570
    %v2603 = vcvt.s32.f32 %v2571
    %v2604 = vcvt.s32.f32 %v2572
    %v2605 = vcvt.s32.f32 %v2573
    %v2606 = vcvt.s32.f32 %v2574
    %v2607 = vcvt.s32.f32 %v2575
    %v2608 = vcvt.s32.f32 %v2576
    %v2609 = vpack.c.bf16 %v2578, %v2577
    %v2610 = vpack.c.bf16 %v2580, %v2579
    %v2611 = vpack.c.bf16 %v2582, %v2581
    %v2612 = vpack.c.bf16 %v2584, %v2583
    %v2613 = vpack.c.bf16 %v2586, %v2585
    %v2614 = vpack.c.bf16 %v2588, %v2587
    %v2615 = vpack.c.bf16 %v2590, %v2589
    %v2616 = vpack.c.bf16 %v2592, %v2591
    %v2617 = vpack.c.bf16 %v2594, %v2593
    %v2618 = vpack.c.bf16 %v2596, %v2595
    %v2619 = vpack.c.bf16 %v2598, %v2597
    %v2620 = vpack.c.bf16 %v2600, %v2599
    %v2621 = vpack.c.bf16 %v2602, %v2601
    %v2622 = vpack.c.bf16 %v2604, %v2603
    %v2623 = vpack.c.bf16 %v2606, %v2605
    %v2624 = vpack.c.bf16 %v2608, %v2607
    %v2625 = vpack.c.bf16 %v2384, %v2382
    %v2626 = vpack.c.bf16 %v2385, %v2383
    %v2627 = vpack.c.bf16 %v2388, %v2386
    %v2628 = vpack.c.bf16 %v2389, %v2387
    %v2629 = vpack.c.bf16 %v2392, %v2390
    %v2630 = vpack.c.bf16 %v2393, %v2391
    %v2631 = vpack.c.bf16 %v2396, %v2394
    %v2632 = vpack.c.bf16 %v2397, %v2395
    %v2633 = vpack.c.bf16 %v2400, %v2398
    %v2634 = vpack.c.bf16 %v2401, %v2399
    %v2635 = vpack.c.bf16 %v2404, %v2402
    %v2636 = vpack.c.bf16 %v2405, %v2403
    %v2637 = vpack.c.bf16 %v2408, %v2406
    %v2638 = vpack.c.bf16 %v2409, %v2407
    %v2639 = vpack.c.bf16 %v2412, %v2410
    %v2640 = vpack.c.bf16 %v2413, %v2411
    %v2641 = vpack.c.bf16 %v2416, %v2414
    %v2642 = vpack.c.bf16 %v2417, %v2415
    %2643 = vmatprep.subr.bf16.mxu0 0
    %2644 = vmatpush1.bf16.msra.mxu0 %v2616
    %2645 = vmatprep.subr.bf16.mxu0 0
    %2646 = vmatpush1.bf16.msra.mxu0 %v2615
    %2647 = vmatprep.subr.bf16.mxu0 0
    %2648 = vmatpush1.bf16.msra.mxu0 %v2614
    %2649 = vmatprep.subr.bf16.mxu0 0
    %2650 = vmatpush1.bf16.msra.mxu0 %v2613
    %2651 = vmatprep.subr.bf16.mxu0 0
    %2652 = vmatpush1.bf16.msra.mxu0 %v2612
    %2653 = vmatprep.subr.bf16.mxu0 0
    %2654 = vmatpush1.bf16.msra.mxu0 %v2611
    %2655 = vmatprep.subr.bf16.mxu0 0
    %2656 = vmatpush1.bf16.msra.mxu0 %v2610
    %2657 = vmatprep.subr.bf16.mxu0 0
    %2658 = vmatpush1.bf16.msra.mxu0 %v2609
    %2659 = vmatprep.subr.bf16.mxu0 0
    %2660 = vmatpush2.bf16.msra.mxu0 %v2624
    %2661 = vmatprep.subr.bf16.mxu0 0
    %2662 = vmatpush2.bf16.msra.mxu0 %v2623
    %2663 = vmatprep.subr.bf16.mxu0 0
    %2664 = vmatpush2.bf16.msra.mxu0 %v2622
    %2665 = vmatprep.subr.bf16.mxu0 0
    %2666 = vmatpush2.bf16.msra.mxu0 %v2621
    %2667 = vmatprep.subr.bf16.mxu0 0
    %2668 = vmatpush2.bf16.msra.mxu0 %v2620
    %2669 = vmatprep.subr.bf16.mxu0 0
    %2670 = vmatpush2.bf16.msra.mxu0 %v2619
    %2671 = vmatprep.subr.bf16.mxu0 0
    %2672 = vmatpush2.bf16.msra.mxu0 %v2618
    %2673 = vmatprep.subr.bf16.mxu0 0
    %2674 = vmatpush2.bf16.msra.mxu0 %v2617
    %2675 = vmatprep.mubr.bf16.mxu0 %v2626
    %2676 = vmatmul.mubr.bf16.gmra.mxu0 %v2625
    %v2677 = vpop.f32.mrf.mxu0
    %v2678 = vadd.f32 0.0, %v2677
    %v2679 = vpop.f32.mrf.mxu0
    %v2680 = vpop.f32.mrf.mxu0
    %v2681 = vadd.f32 0.0, %v2680
    %v2682 = vpop.f32.mrf.mxu0
    %2683 = vmatprep.mubr.bf16.mxu0 %v2628
    %2684 = vmatmul.mubr.bf16.gmra.mxu0 %v2627
    %v2685 = vpop.f32.mrf.mxu0
    %v2686 = vadd.f32 0.0, %v2685
    %v2687 = vpop.f32.mrf.mxu0
    %v2688 = vpop.f32.mrf.mxu0
    %v2689 = vadd.f32 0.0, %v2688
    %v2690 = vpop.f32.mrf.mxu0
    %2691 = vmatprep.mubr.bf16.mxu0 %v2630
    %2692 = vmatmul.mubr.bf16.gmra.mxu0 %v2629
    %v2693 = vpop.f32.mrf.mxu0
    %v2694 = vadd.f32 0.0, %v2693
    %v2695 = vpop.f32.mrf.mxu0
    %v2696 = vpop.f32.mrf.mxu0
    %v2697 = vadd.f32 0.0, %v2696
    %v2698 = vpop.f32.mrf.mxu0
    %2699 = vmatprep.mubr.bf16.mxu0 %v2632
    %2700 = vmatmul.mubr.bf16.gmra.mxu0 %v2631
    %v2701 = vpop.f32.mrf.mxu0
    %v2702 = vadd.f32 0.0, %v2701
    %v2703 = vpop.f32.mrf.mxu0
    %v2704 = vpop.f32.mrf.mxu0
    %v2705 = vadd.f32 0.0, %v2704
    %v2706 = vpop.f32.mrf.mxu0
    %2707 = vmatprep.mubr.bf16.mxu0 %v2634
    %2708 = vmatmul.mubr.bf16.gmra.mxu0 %v2633
    %v2709 = vpop.f32.mrf.mxu0
    %v2710 = vadd.f32 0.0, %v2709
    %v2711 = vpop.f32.mrf.mxu0
    %v2712 = vpop.f32.mrf.mxu0
    %v2713 = vadd.f32 0.0, %v2712
    %v2714 = vpop.f32.mrf.mxu0
    %2715 = vmatprep.mubr.bf16.mxu0 %v2636
    %2716 = vmatmul.mubr.bf16.gmra.mxu0 %v2635
    %v2717 = vpop.f32.mrf.mxu0
    %v2718 = vadd.f32 0.0, %v2717
    %v2719 = vpop.f32.mrf.mxu0
    %v2720 = vpop.f32.mrf.mxu0
    %v2721 = vadd.f32 0.0, %v2720
    %v2722 = vpop.f32.mrf.mxu0
    %2723 = vmatprep.mubr.bf16.mxu0 %v2638
    %2724 = vmatmul.mubr.bf16.gmra.mxu0 %v2637
    %v2725 = vpop.f32.mrf.mxu0
    %v2726 = vadd.f32 0.0, %v2725
    %v2727 = vpop.f32.mrf.mxu0
    %v2728 = vpop.f32.mrf.mxu0
    %v2729 = vadd.f32 0.0, %v2728
    %v2730 = vpop.f32.mrf.mxu0
    %2731 = vmatprep.mubr.bf16.mxu0 %v2640
    %2732 = vmatmul.mubr.bf16.gmra.mxu0 %v2639
    %v2733 = vpop.f32.mrf.mxu0
    %v2734 = vadd.f32 0.0, %v2733
    %v2735 = vpop.f32.mrf.mxu0
    %v2736 = vpop.f32.mrf.mxu0
    %v2737 = vadd.f32 0.0, %v2736
    %v2738 = vpop.f32.mrf.mxu0
    %2739 = vmatprep.mubr.bf16.mxu0 %v2642
    %2740 = vmatmul.mubr.bf16.gmra.mxu0 %v2641
    %v2741 = vpop.f32.mrf.mxu0
    %v2742 = vpop.f32.mrf.mxu0
    %v2743 = vpop.f32.mrf.mxu0
    %v2744 = vpop.f32.mrf.mxu0
    %2745 = vdwg.mxu0
    %vm2746 = vcmask 7172
    %2747 = vst.msk [vmem:[%s1 - $0x4] sm:$0xf0] %vm2746, %v2678
    %vm2748 = vcmask 7168
    %2749 = vst.msk [vmem:[%s1 + $0x4] sm:$0xff] %vm2748, %v2681
    %2750 = vst.msk [vmem:[%s1 + $0xc] sm:$0xff] %vm2748, %v2686
    %2751 = vst.msk [vmem:[%s1 + $0x14] sm:$0xff] %vm2748, %v2689
    %2752 = vst.msk [vmem:[%s1 + $0x1c] sm:$0xff] %vm2748, %v2694
    %2753 = vst.msk [vmem:[%s1 + $0x24] sm:$0xff] %vm2748, %v2697
    %2754 = vst.msk [vmem:[%s1 + $0x2c] sm:$0xff] %vm2748, %v2702
    %2755 = vst.msk [vmem:[%s1 + $0x34] sm:$0xff] %vm2748, %v2705
    %2756 = vst.msk [vmem:[%s1 + $0x3c] sm:$0xff] %vm2748, %v2710
    %2757 = vst.msk [vmem:[%s1 + $0x44] sm:$0xff] %vm2748, %v2713
    %2758 = vst.msk [vmem:[%s1 + $0x4c] sm:$0xff] %vm2748, %v2718
    %2759 = vst.msk [vmem:[%s1 + $0x54] sm:$0xff] %vm2748, %v2721
    %2760 = vst.msk [vmem:[%s1 + $0x5c] sm:$0xff] %vm2748, %v2726
    %2761 = vst.msk [vmem:[%s1 + $0x64] sm:$0xff] %vm2748, %v2729
    %2762 = vst.msk [vmem:[%s1 + $0x6c] sm:$0xff] %vm2748, %v2734
    %vm2763 = vcmask 3072
    %2764 = vst.msk [vmem:[%s1 + $0x74] sm:$0xf] %vm2763, %v2737
    %vm2765 = vcmp.ge.s32.totalorder %v901, 4
    %vm2766 = vcmp.ge.s32.totalorder %v2418, 4
    %vm2767 = vcmp.ge.s32.totalorder %v2419, 4
    %vm2768 = vcmp.ge.s32.totalorder %v2420, 4
    %vm2769 = vcmp.ge.s32.totalorder %v2421, 4
    %vm2770 = vcmp.ge.s32.totalorder %v2422, 4
    %vm2771 = vcmp.ge.s32.totalorder %v2423, 4
    %vm2772 = vcmp.ge.s32.totalorder %v2424, 4
    %vm2773 = vcmp.ge.s32.totalorder %v2425, 4
    %vm2774 = vcmp.ge.s32.totalorder %v2426, 4
    %vm2775 = vcmp.ge.s32.totalorder %v2427, 4
    %vm2776 = vcmp.ge.s32.totalorder %v2428, 4
    %vm2777 = vcmp.ge.s32.totalorder %v2429, 4
    %vm2778 = vcmp.ge.s32.totalorder %v2430, 4
    %vm2779 = vcmp.ge.s32.totalorder %v2431, 4
    %vm2780 = vcmp.ge.s32.totalorder %v2432, 4
    %vm2781 = vcmp.ge.s32.totalorder %v2433, 4
    %vm2782 = vcmp.ge.s32.totalorder %v2434, 4
    %vm2783 = vcmp.lt.s32.totalorder %v901, 124
    %vm2784 = vcmp.lt.s32.totalorder %v2418, 124
    %vm2785 = vcmp.lt.s32.totalorder %v2419, 124
    %vm2786 = vcmp.lt.s32.totalorder %v2420, 124
    %vm2787 = vcmp.lt.s32.totalorder %v2421, 124
    %vm2788 = vcmp.lt.s32.totalorder %v2422, 124
    %vm2789 = vcmp.lt.s32.totalorder %v2423, 124
    %vm2790 = vcmp.lt.s32.totalorder %v2424, 124
    %vm2791 = vcmp.lt.s32.totalorder %v2425, 124
    %vm2792 = vcmp.lt.s32.totalorder %v2426, 124
    %vm2793 = vcmp.lt.s32.totalorder %v2427, 124
    %vm2794 = vcmp.lt.s32.totalorder %v2428, 124
    %vm2795 = vcmp.lt.s32.totalorder %v2429, 124
    %vm2796 = vcmp.lt.s32.totalorder %v2430, 124
    %vm2797 = vcmp.lt.s32.totalorder %v2431, 124
    %vm2798 = vcmp.lt.s32.totalorder %v2432, 124
    %vm2799 = vcmp.lt.s32.totalorder %v2433, 124
    %vm2800 = vcmp.lt.s32.totalorder %v2434, 124
    %vm2801 = vmand %vm2765, %vm2783
    %vm2802 = vmand %vm2766, %vm2784
    %vm2803 = vmand %vm2767, %vm2785
    %vm2804 = vmand %vm2768, %vm2786
    %vm2805 = vmand %vm2769, %vm2787
    %vm2806 = vmand %vm2770, %vm2788
    %vm2807 = vmand %vm2771, %vm2789
    %vm2808 = vmand %vm2772, %vm2790
    %vm2809 = vmand %vm2773, %vm2791
    %vm2810 = vmand %vm2774, %vm2792
    %vm2811 = vmand %vm2775, %vm2793
    %vm2812 = vmand %vm2776, %vm2794
    %vm2813 = vmand %vm2777, %vm2795
    %vm2814 = vmand %vm2778, %vm2796
    %vm2815 = vmand %vm2779, %vm2797
    %vm2816 = vmand %vm2780, %vm2798
    %vm2817 = vmand %vm2781, %vm2799
    %vm2818 = vmand %vm2782, %vm2800
    %v2819 = vsel %vm2801, 1, 0
    %v2820 = vsel %vm2802, 1, 0
    %v2821 = vsel %vm2803, 1, 0
    %v2822 = vsel %vm2804, 1, 0
    %v2823 = vsel %vm2805, 1, 0
    %v2824 = vsel %vm2806, 1, 0
    %v2825 = vsel %vm2807, 1, 0
    %v2826 = vsel %vm2808, 1, 0
    %v2827 = vsel %vm2809, 1, 0
    %v2828 = vsel %vm2810, 1, 0
    %v2829 = vsel %vm2811, 1, 0
    %v2830 = vsel %vm2812, 1, 0
    %v2831 = vsel %vm2813, 1, 0
    %v2832 = vsel %vm2814, 1, 0
    %v2833 = vsel %vm2815, 1, 0
    %v2834 = vsel %vm2816, 1, 0
    %v2835 = vsel %vm2817, 1, 0
    %v2836 = vsel %vm2818, 1, 0
    %v2837 = vcvt.s32.f32 %v2819
    %v2838 = vcvt.s32.f32 %v2820
    %v2839 = vcvt.s32.f32 %v2821
    %v2840 = vcvt.s32.f32 %v2822
    %v2841 = vcvt.s32.f32 %v2823
    %v2842 = vcvt.s32.f32 %v2824
    %v2843 = vcvt.s32.f32 %v2825
    %v2844 = vcvt.s32.f32 %v2826
    %v2845 = vcvt.s32.f32 %v2827
    %v2846 = vcvt.s32.f32 %v2828
    %v2847 = vcvt.s32.f32 %v2829
    %v2848 = vcvt.s32.f32 %v2830
    %v2849 = vcvt.s32.f32 %v2831
    %v2850 = vcvt.s32.f32 %v2832
    %v2851 = vcvt.s32.f32 %v2833
    %v2852 = vcvt.s32.f32 %v2834
    %v2853 = vcvt.s32.f32 %v2835
    %v2854 = vcvt.s32.f32 %v2836
    %v2855 = vmul.f32 %v2382, %v2837
    %v2856 = vmul.f32 %v2383, %v2837
    %v2857 = vmul.f32 %v2384, %v2838
    %v2858 = vmul.f32 %v2385, %v2838
    %v2859 = vmul.f32 %v2386, %v2839
    %v2860 = vmul.f32 %v2387, %v2839
    %v2861 = vmul.f32 %v2388, %v2840
    %v2862 = vmul.f32 %v2389, %v2840
    %v2863 = vmul.f32 %v2390, %v2841
    %v2864 = vmul.f32 %v2391, %v2841
    %v2865 = vmul.f32 %v2392, %v2842
    %v2866 = vmul.f32 %v2393, %v2842
    %v2867 = vmul.f32 %v2394, %v2843
    %v2868 = vmul.f32 %v2395, %v2843
    %v2869 = vmul.f32 %v2396, %v2844
    %v2870 = vmul.f32 %v2397, %v2844
    %v2871 = vmul.f32 %v2398, %v2845
    %v2872 = vmul.f32 %v2399, %v2845
    %v2873 = vmul.f32 %v2400, %v2846
    %v2874 = vmul.f32 %v2401, %v2846
    %v2875 = vmul.f32 %v2402, %v2847
    %v2876 = vmul.f32 %v2403, %v2847
    %v2877 = vmul.f32 %v2404, %v2848
    %v2878 = vmul.f32 %v2405, %v2848
    %v2879 = vmul.f32 %v2406, %v2849
    %v2880 = vmul.f32 %v2407, %v2849
    %v2881 = vmul.f32 %v2408, %v2850
    %v2882 = vmul.f32 %v2409, %v2850
    %v2883 = vmul.f32 %v2410, %v2851
    %v2884 = vmul.f32 %v2411, %v2851
    %v2885 = vmul.f32 %v2412, %v2852
    %v2886 = vmul.f32 %v2413, %v2852
    %v2887 = vmul.f32 %v2414, %v2853
    %v2888 = vmul.f32 %v2415, %v2853
    %v2889 = vmul.f32 %v2416, %v2854
    %v2890 = vmul.f32 %v2417, %v2854
    %v2891 = vadd.f32 %v2855, %v2857
    %v2892 = vadd.f32 %v2891, %v2859
    %v2893 = vadd.f32 %v2892, %v2861
    %v2894 = vadd.f32 %v2893, %v2863
    %v2895 = vadd.f32 %v2894, %v2865
    %v2896 = vadd.f32 %v2895, %v2867
    %v2897 = vadd.f32 %v2896, %v2869
    %v2898 = vadd.f32 %v2897, %v2871
    %v2899 = vadd.f32 %v2898, %v2873
    %v2900 = vadd.f32 %v2899, %v2875
    %v2901 = vadd.f32 %v2900, %v2877
    %v2902 = vadd.f32 %v2901, %v2879
    %v2903 = vadd.f32 %v2902, %v2881
    %v2904 = vadd.f32 %v2903, %v2883
    %v2905 = vadd.f32 %v2904, %v2885
    %v2906 = vadd.f32 %v2905, %v2887
    %v2907 = vadd.f32 %v2906, %v2889
    %v2908 = vrot.slane %v2907, 4
    %v2909 = vadd.f32 %v2907, %v2908
    %v2910 = vrot.slane %v2909, 2
    %v2911 = vadd.f32 %v2909, %v2910
    %v2912 = vrot.slane %v2911, 1
    %v2913 = vadd.f32 %v2911, %v2912
    %v2914 = vadd.f32 %v2856, %v2858
    %v2915 = vadd.f32 %v2914, %v2860
    %v2916 = vadd.f32 %v2915, %v2862
    %v2917 = vadd.f32 %v2916, %v2864
    %v2918 = vadd.f32 %v2917, %v2866
    %v2919 = vadd.f32 %v2918, %v2868
    %v2920 = vadd.f32 %v2919, %v2870
    %v2921 = vadd.f32 %v2920, %v2872
    %v2922 = vadd.f32 %v2921, %v2874
    %v2923 = vadd.f32 %v2922, %v2876
    %v2924 = vadd.f32 %v2923, %v2878
    %v2925 = vadd.f32 %v2924, %v2880
    %v2926 = vadd.f32 %v2925, %v2882
    %v2927 = vadd.f32 %v2926, %v2884
    %v2928 = vadd.f32 %v2927, %v2886
    %v2929 = vadd.f32 %v2928, %v2888
    %v2930 = vadd.f32 %v2929, %v2890
    %v2931 = vrot.slane %v2930, 4
    %v2932 = vadd.f32 %v2930, %v2931
    %v2933 = vrot.slane %v2932, 2
    %v2934 = vadd.f32 %v2932, %v2933
    %v2935 = vrot.slane %v2934, 1
    %v2936 = vadd.f32 %v2934, %v2935
    %v2939 = vcombine.low %v2913, %v2936
    %v2941 = vunpack.c.l.s4 1966171168
    %v2942 = vunpack.c.0.s8 %v2941
    %v2943 = vlaneseq
    %v2944 = vshrl.u32 %v2943, 7
    %v2945 = vsub.s32 %v2942, %v2944
    %v2946 = vrot.slane %v2939, %v2945
    %v2948 = vunpack.c.l.s4 1966171168
    %v2949 = vunpack.c.0.s8 %v2948
    %v2950 = vlaneseq
    %v2951 = vshrl.u32 %v2950, 7
    %v2952 = vsub.s32 %v2949, %v2951
    %v2953 = vrot.slane %v2946, %v2952
    %v2955 = vlaneseq
    %vm2956 = vcmp.ge.s32.totalorder %v2955, 0
    %vm2957 = vcmp.lt.s32.totalorder %v2955, 200
    %vm2958 = vmand %vm2956, %vm2957
    %2959 = vst.msk [vmem:[#allocation3] sm:$0x3] %vm2958, %v2953
    // Predicated region
    $region6: #{tpu_custom_call.1} parent=1 // pred_check
      _
    $region7: #{tpu_custom_call.1} parent=1 // pred_check_branch
      %2961 = sbr.rel (0) target = $region9
    $region8: #{tpu_custom_call.1} parent=1 // pred_region
      _
    $region9: #{tpu_custom_call.1} parent=1 // pred_fallthru
      _
    // Predicated region
    $region10: #{tpu_custom_call.1} parent=1 // pred_check
      _
    $region11: #{tpu_custom_call.1} parent=1 // pred_check_branch
      %2963 = sbr.rel (0) target = $region13
    $region12: #{tpu_custom_call.1} parent=1 // pred_region
      %s2965 = ssub.s32 32, 32
      %2966 = vsyncadd [#allocation4], %s2965
      %s2968 = sshll.u32 [#allocation3], 4
      %s2969 = int_to_ptr.vmem [resolvable:$true] %s2968
      %2971 = dma.vmem_to_hbm [thread:$0]  %s2969, 32, %s2, [#allocation4]
    $region13: #{tpu_custom_call.1} parent=1 // pred_fallthru
      _
    // Predicated region
    $region14: #{tpu_custom_call.1} parent=1 // pred_check
      _
    $region15: #{tpu_custom_call.1} parent=1 // pred_check_branch
      %2973 = sbr.rel (0) target = $region17
    $region16: #{tpu_custom_call.1} parent=1 // pred_region
      _
    $region17: #{tpu_custom_call.1} parent=1 // pred_fallthru
      _
    // Predicated region
    $region18: #{tpu_custom_call.1} parent=1 // pred_check
      _
    $region19: #{tpu_custom_call.1} parent=1 // pred_check_branch
      %2975 = sbr.rel (0) target = $region21
    $region20: #{tpu_custom_call.1} parent=1 // pred_region
      %2976 = dma.done [#allocation4], 32
    $region21: #{tpu_custom_call.1} parent=1 // pred_fallthru
      _
    %2977 = vsyncpa [#allocation4], 1

</llo_original>
